<compile_context>
chip_gen: v5e
topology: v5e:2x2
jax: 0.10.0
libtpu: 0.0.40
codegen_flags: <defaults>
</compile_context>

<pallas_src>
import functools

import jax
import jax.numpy as jnp
from jax.experimental import pallas as pl
from jax.experimental.pallas import tpu as pltpu


def vcm_kernel(xv_ref, xa_ref, wbb_ref, bbb_ref, wfc_ref, bfc_ref, o_ref,
               acc_v_ref, acc_a_ref, *, bt, seg_v_rows, seg_a_rows, inv_n):
    k = pl.program_id(1)

    @pl.when(k == 0)
    def _init():
        acc_v_ref[...] = jnp.zeros_like(acc_v_ref)
        acc_a_ref[...] = jnp.zeros_like(acc_a_ref)

    # nn_X_input stand-in: video/audio occupy disjoint row groups, so there is
    # no VMEM concatenate -- two MXU dots against the same weight K-tile.
    # Cast activations to bf16 in VMEM right before the dot; accumulate in f32.
    w = wbb_ref[...]
    acc_v_ref[...] += jnp.dot(xv_ref[...].astype(jnp.bfloat16), w,
                              preferred_element_type=jnp.float32)
    acc_a_ref[...] += jnp.dot(xa_ref[...].astype(jnp.bfloat16), w,
                              preferred_element_type=jnp.float32)

    @pl.when(k == pl.num_programs(1) - 1)
    def _finalize():
        d_feat = acc_v_ref.shape[-1]
        # synthetic backbone epilogue (bias + ReLU) in f32
        feats_v = jnp.maximum(acc_v_ref[...] + bbb_ref[...], 0.0)
        feats_a = jnp.maximum(acc_a_ref[...] + bbb_ref[...], 0.0)
        # mean over n_sample then mean over n_seg == joint uniform mean
        sum_v = feats_v.reshape(bt, seg_v_rows, d_feat).sum(axis=1)
        sum_a = feats_a.reshape(bt, seg_a_rows, d_feat).sum(axis=1)
        pooled = (sum_v + sum_a) * inv_n                       # (bt, d_feat) f32
        # batched last_fc: bf16 MXU feed, f32 accumulation, lane-dense output
        logits = jnp.dot(pooled.astype(jnp.bfloat16), wfc_ref[...],
                         preferred_element_type=jnp.float32)
        o_ref[...] = (logits + bfc_ref[...]).astype(o_ref.dtype)


def _num_tensorcores():
    # 2 TensorCores per device on v7x (and megacore v4/v5p); 1 on v5e/v6e.
    try:
        dev = jax.devices()[0]
        if getattr(dev, "platform", "") != "tpu":
            return 1
        kind = getattr(dev, "device_kind", "").lower()
        if any(t in kind for t in ("v7", "7x", "v4", "v5p")):
            return 2
    except Exception:
        pass
    return 1


def _choose_bt(B, rows_per_elem, num_cores):
    """Batch elements per grid step.

    Legal values: divisors of B that are multiples of 8 (keeps every block's
    sublane dim 8-aligned), or bt == B (full-extent blocks, always legal).
    Targets ~256 MXU rows per step; on multi-TC chips keeps >= num_cores
    'parallel' grid steps so no TensorCore idles.
    """
    target = max(1, 256 // max(1, rows_per_elem))
    cands = [d for d in range(8, B + 1, 8) if B % d == 0]
    if B not in cands:
        cands.append(B)
    if num_cores > 1:
        multi = [d for d in cands if B // d >= num_cores]
        if multi:
            cands = multi
    under = [d for d in cands if d <= target]
    return max(under) if under else min(cands)


def _choose_tk(d_in):
    """Reduction tile over d_in: multiple of 128 (MXU aligned on all gens),
    or the full extent when d_in is small enough to keep resident."""
    if d_in <= 2048:
        return d_in
    for tk in (2048, 1536, 1024, 768, 512, 384, 256, 128):
        if d_in % tk == 0:
            return tk
    return d_in  # odd d_in: one full-extent K block


def vcm_forward(x_video, x_audio, w_bb, b_bb, w_fc, b_fc):
    B, n_sample, n_vseg, C, H, W = x_video.shape
    n_aseg = x_audio.shape[2]
    d_in = C * H * W
    d_feat = w_bb.shape[1]
    num_class = w_fc.shape[1]

    # zero-copy row-major flattening; keep the incoming activation dtype (the
    # kernel casts to bf16 in VMEM) -> no extra HBM astype pass.
    xv = x_video.reshape(B * n_sample * n_vseg, d_in)
    xa = x_audio.reshape(B * n_sample * n_aseg, d_in)
    w_bb_bf16 = w_bb.astype(jnp.bfloat16)
    b_bb_2d = b_bb.reshape(1, d_feat).astype(jnp.float32)

    # pad num_class up to a multiple of 128 -> lane-dense unmasked stores;
    # FC weight in bf16 (single MXU pass, half the VMEM); bias stays f32.
    ncp = ((num_class + 127) // 128) * 128
    w_fc_p = jnp.zeros((d_feat, ncp), jnp.bfloat16).at[:, :num_class].set(
        w_fc.astype(jnp.bfloat16))
    b_fc_p = jnp.zeros((1, ncp), jnp.float32).at[:, :num_class].set(
        b_fc.reshape(1, num_class).astype(jnp.float32))

    seg_v_rows = n_sample * n_vseg
    seg_a_rows = n_sample * n_aseg
    rows_per_elem = seg_v_rows + seg_a_rows
    num_cores = _num_tensorcores()
    bt = _choose_bt(B, rows_per_elem, num_cores)
    tk = _choose_tk(d_in)
    n_b = B // bt
    n_k = d_in // tk

    # VMEM budget (count double buffers for streamed operands, single buffers
    # for grid-invariant ones + accumulators); stay well under v7x's 64 MiB.
    act_bytes = xv.dtype.itemsize
    wbb_bufs = 1 if n_k == 1 else 2
    need = (2 * bt * seg_v_rows * tk * act_bytes        # xv blocks (2 bufs)
            + 2 * bt * seg_a_rows * tk * act_bytes      # xa blocks (2 bufs)
            + wbb_bufs * tk * d_feat * 2                # w_bb bf16
            + d_feat * 4 + d_feat * ncp * 2 + ncp * 4   # invariant params
            + 2 * bt * ncp * 4                          # output blocks
            + bt * rows_per_elem * d_feat * 4)          # f32 accumulators
    vmem_limit = int(min(max(2 * need, 32 * 2 ** 20), 56 * 2 ** 20))

    kernel = functools.partial(
        vcm_kernel, bt=bt, seg_v_rows=seg_v_rows, seg_a_rows=seg_a_rows,
        inv_n=1.0 / float(rows_per_elem))

    def _run(single_buffer_weights):
        def _const_spec(shape):
            # grid-invariant operand: index_map constant across the grid
            if single_buffer_weights:
                return pl.BlockSpec(shape, lambda b, k: (0, 0),
                                    pipeline_mode=pl.Buffered(1))
            return pl.BlockSpec(shape, lambda b, k: (0, 0))

        wbb_spec = (_const_spec((tk, d_feat)) if n_k == 1 else
                    pl.BlockSpec((tk, d_feat), lambda b, k: (k, 0)))

        grid_spec = pltpu.PrefetchScalarGridSpec(
            num_scalar_prefetch=0,
            grid=(n_b, n_k),                      # reduction axis (K) last
            in_specs=[
                pl.BlockSpec((bt * seg_v_rows, tk), lambda b, k: (b, k)),
                pl.BlockSpec((bt * seg_a_rows, tk), lambda b, k: (b, k)),
                wbb_spec,
                _const_spec((1, d_feat)),
                _const_spec((d_feat, ncp)),
                _const_spec((1, ncp)),
            ],
            out_specs=pl.BlockSpec((bt, ncp), lambda b, k: (b, 0)),
            scratch_shapes=[
                pltpu.VMEM((bt * seg_v_rows, d_feat), jnp.float32),
                pltpu.VMEM((bt * seg_a_rows, d_feat), jnp.float32),
            ],
        )
        return pl.pallas_call(
            kernel,
            out_shape=jax.ShapeDtypeStruct((B, ncp), jnp.float32),
            grid_spec=grid_spec,
            compiler_params=pltpu.CompilerParams(
                dimension_semantics=("parallel", "arbitrary"),
                vmem_limit_bytes=vmem_limit),
        )(xv, xa, w_bb_bf16, b_bb_2d, w_fc_p, b_fc_p)

    try:
        out = _run(True)
    except Exception:
        # TODO(synk): pl.Buffered(1) single-buffering rejected by this jax
        # version; fall back to default double-buffered invariant weights.
        out = _run(False)

    return out[:, :num_class]


def vcm_reference(x_video, x_audio, w_bb, b_bb, w_fc, b_fc):
    B, n_sample, n_vseg, C, H, W = x_video.shape
    x = jnp.concatenate([x_video, x_audio], axis=2).astype(jnp.float32)
    x = x.reshape(B, n_sample, x.shape[2], C * H * W)
    feats = jnp.einsum("bsgd,df->bsgf", x, w_bb.astype(jnp.float32),
                       precision=jax.lax.Precision.HIGHEST)
    feats = jnp.maximum(feats + b_bb.reshape(-1).astype(jnp.float32), 0.0)
    pooled = feats.mean(axis=1).mean(axis=1)              # mean(dim=1), mean(dim=1)
    return (jnp.dot(pooled, w_fc, precision=jax.lax.Precision.HIGHEST)
            + b_fc.reshape(-1))                           # last_fc


if __name__ == "__main__":
    key = jax.random.PRNGKey(0)
    k1, k2, k3, k4, k5, k6 = jax.random.split(key, 6)

    # small shapes consistent with the module
    B, n_sample = 16, 2
    n_vseg, n_aseg = 4, 4          # video_segments=4, audio_segments=4, motion=False
    C, H, W = 4, 8, 8
    d_in = C * H * W               # 256
    d_feat = 128                   # nn_backbone.features_dim_out
    num_class = 16                 # param_TSM['num_class']

    # bf16 activations (MXU-native); backbone weight bf16, FC params f32
    x_video = jax.random.normal(
        k1, (B, n_sample, n_vseg, C, H, W), jnp.float32).astype(jnp.bfloat16)
    x_audio = jax.random.normal(
        k2, (B, n_sample, n_aseg, C, H, W), jnp.float32).astype(jnp.bfloat16)
    w_bb = (0.02 * jax.random.normal(k3, (d_in, d_feat), jnp.float32)
            ).astype(jnp.bfloat16)
    b_bb = 0.02 * jax.random.normal(k4, (1, d_feat), jnp.float32)
    w_fc = 0.02 * jax.random.normal(k5, (d_feat, num_class), jnp.float32)
    b_fc = 0.02 * jax.random.normal(k6, (1, num_class), jnp.float32)

    out = jax.block_until_ready(
        vcm_forward(x_video, x_audio, w_bb, b_bb, w_fc, b_fc))

    ref = vcm_reference(x_video, x_audio, w_bb, b_bb, w_fc, b_fc)
    assert out.shape == (B, num_class)
    assert jnp.allclose(out, ref, atol=2e-3, rtol=2e-3), "mismatch vs reference"

    print("KERNEL_OK")
</pallas_src>

<mosaic_0001>
module attributes {stable_mosaic.version = 11 : i64} {
  func.func @vcm_kernel(%arg0: i32, %arg1: i32, %arg2: memref<128x256xbf16, #tpu.memory_space<vmem>>, %arg3: memref<128x256xbf16, #tpu.memory_space<vmem>>, %arg4: memref<256x128xbf16, #tpu.memory_space<vmem>>, %arg5: memref<1x128xf32, #tpu.memory_space<vmem>>, %arg6: memref<128x128xbf16, #tpu.memory_space<vmem>>, %arg7: memref<1x128xf32, #tpu.memory_space<vmem>>, %arg8: memref<16x128xf32, #tpu.memory_space<vmem>>, %arg9: memref<128x128xf32, #tpu.memory_space<vmem>>, %arg10: memref<128x128xf32, #tpu.memory_space<vmem>>) attributes {dimension_semantics = [#tpu.dimension_semantics<parallel>, #tpu.dimension_semantics<arbitrary>], iteration_bounds = array<i64: 1, 1>, scalar_prefetch = 0 : i64, scratch_operands = 2 : i64, tpu.core_type = #tpu.core_type<tc>, window_params = [{transform_indices = @transform_0, window_bounds = array<i64: 128, 256>}, {transform_indices = @transform_1, window_bounds = array<i64: 128, 256>}, {pipeline_mode = #tpu.pipeline_mode<synchronous>, transform_indices = @transform_2, window_bounds = array<i64: 256, 128>}, {pipeline_mode = #tpu.pipeline_mode<synchronous>, transform_indices = @transform_3, window_bounds = array<i64: 1, 128>}, {pipeline_mode = #tpu.pipeline_mode<synchronous>, transform_indices = @transform_4, window_bounds = array<i64: 128, 128>}, {pipeline_mode = #tpu.pipeline_mode<synchronous>, transform_indices = @transform_5, window_bounds = array<i64: 1, 128>}, {transform_indices = @transform_6, window_bounds = array<i64: 16, 128>}]} {
    %c0_i32 = arith.constant 0 : i32
    %0 = arith.cmpi eq, %arg1, %c0_i32 : i32
    %1 = arith.extui %0 : i1 to i32
    %c0_i32_0 = arith.constant 0 : i32
    %2 = arith.cmpi ne, %1, %c0_i32_0 : i32
    scf.if %2 {
      %cst_17 = arith.constant 0.000000e+00 : f32
      %17 = vector.broadcast %cst_17 : f32 to vector<128x128xf32>
      %c0_18 = arith.constant 0 : index
      %c0_19 = arith.constant 0 : index
      %18 = vector.load %arg9[%c0_18, %c0_19] : memref<128x128xf32, #tpu.memory_space<vmem>>, vector<128x128xf32>
      tpu.vector_store %arg9[%c0_18, %c0_19], %17 {strides = array<i32>} : memref<128x128xf32, #tpu.memory_space<vmem>>, vector<128x128xf32>,
      %cst_20 = arith.constant 0.000000e+00 : f32
      %19 = vector.broadcast %cst_20 : f32 to vector<128x128xf32>
      %c0_21 = arith.constant 0 : index
      %c0_22 = arith.constant 0 : index
      %20 = vector.load %arg10[%c0_21, %c0_22] : memref<128x128xf32, #tpu.memory_space<vmem>>, vector<128x128xf32>
      tpu.vector_store %arg10[%c0_21, %c0_22], %19 {strides = array<i32>} : memref<128x128xf32, #tpu.memory_space<vmem>>, vector<128x128xf32>,
    } else {
    }
    %c0 = arith.constant 0 : index
    %c0_1 = arith.constant 0 : index
    %3 = vector.load %arg4[%c0, %c0_1] : memref<256x128xbf16, #tpu.memory_space<vmem>>, vector<256x128xbf16>
    %c0_2 = arith.constant 0 : index
    %c0_3 = arith.constant 0 : index
    %4 = vector.load %arg9[%c0_2, %c0_3] : memref<128x128xf32, #tpu.memory_space<vmem>>, vector<128x128xf32>
    %c0_4 = arith.constant 0 : index
    %c0_5 = arith.constant 0 : index
    %5 = vector.load %arg2[%c0_4, %c0_5] : memref<128x256xbf16, #tpu.memory_space<vmem>>, vector<128x256xbf16>
    %cst = arith.constant dense<0.000000e+00> : vector<128x128xf32>
    %6 = tpu.matmul %5, %3, %cst {dimension_numbers = #tpu.dot_dimension_numbers<[1], [0], [0], [1], [0, 0, 1, 1], [], []>} : vector<128x256xbf16>, vector<256x128xbf16>, vector<128x128xf32> -> vector<128x128xf32>
    %7 = arith.addf %4, %6 : vector<128x128xf32>
    %c0_6 = arith.constant 0 : index
    %c0_7 = arith.constant 0 : index
    %8 = vector.load %arg9[%c0_6, %c0_7] : memref<128x128xf32, #tpu.memory_space<vmem>>, vector<128x128xf32>
    tpu.vector_store %arg9[%c0_6, %c0_7], %7 {strides = array<i32>} : memref<128x128xf32, #tpu.memory_space<vmem>>, vector<128x128xf32>,
    %c0_8 = arith.constant 0 : index
    %c0_9 = arith.constant 0 : index
    %9 = vector.load %arg10[%c0_8, %c0_9] : memref<128x128xf32, #tpu.memory_space<vmem>>, vector<128x128xf32>
    %c0_10 = arith.constant 0 : index
    %c0_11 = arith.constant 0 : index
    %10 = vector.load %arg3[%c0_10, %c0_11] : memref<128x256xbf16, #tpu.memory_space<vmem>>, vector<128x256xbf16>
    %cst_12 = arith.constant dense<0.000000e+00> : vector<128x128xf32>
    %11 = tpu.matmul %10, %3, %cst_12 {dimension_numbers = #tpu.dot_dimension_numbers<[1], [0], [0], [1], [0, 0, 1, 1], [], []>} : vector<128x256xbf16>, vector<256x128xbf16>, vector<128x128xf32> -> vector<128x128xf32>
    %12 = arith.addf %9, %11 : vector<128x128xf32>
    %c0_13 = arith.constant 0 : index
    %c0_14 = arith.constant 0 : index
    %13 = vector.load %arg10[%c0_13, %c0_14] : memref<128x128xf32, #tpu.memory_space<vmem>>, vector<128x128xf32>
    tpu.vector_store %arg10[%c0_13, %c0_14], %12 {strides = array<i32>} : memref<128x128xf32, #tpu.memory_space<vmem>>, vector<128x128xf32>,
    %c0_i32_15 = arith.constant 0 : i32
    %14 = arith.cmpi eq, %arg1, %c0_i32_15 : i32
    %15 = arith.extui %14 : i1 to i32
    %c0_i32_16 = arith.constant 0 : i32
    %16 = arith.cmpi ne, %15, %c0_i32_16 : i32
    scf.if %16 {
      %c0_17 = arith.constant 0 : index
      %c0_18 = arith.constant 0 : index
      %17 = vector.load %arg9[%c0_17, %c0_18] : memref<128x128xf32, #tpu.memory_space<vmem>>, vector<128x128xf32>
      %c0_19 = arith.constant 0 : index
      %c0_20 = arith.constant 0 : index
      %18 = vector.load %arg5[%c0_19, %c0_20] : memref<1x128xf32, #tpu.memory_space<vmem>>, vector<1x128xf32>
      %19 = vector.broadcast %18 : vector<1x128xf32> to vector<128x128xf32>
      %20 = arith.addf %17, %19 : vector<128x128xf32>
      %cst_21 = arith.constant 0.000000e+00 : f32
      %21 = vector.broadcast %cst_21 : f32 to vector<128x128xf32>
      %22 = arith.maximumf %20, %21 : vector<128x128xf32>
      %c0_22 = arith.constant 0 : index
      %c0_23 = arith.constant 0 : index
      %23 = vector.load %arg10[%c0_22, %c0_23] : memref<128x128xf32, #tpu.memory_space<vmem>>, vector<128x128xf32>
      %c0_24 = arith.constant 0 : index
      %c0_25 = arith.constant 0 : index
      %24 = vector.load %arg5[%c0_24, %c0_25] : memref<1x128xf32, #tpu.memory_space<vmem>>, vector<1x128xf32>
      %25 = vector.broadcast %24 : vector<1x128xf32> to vector<128x128xf32>
      %26 = arith.addf %23, %25 : vector<128x128xf32>
      %cst_26 = arith.constant 0.000000e+00 : f32
      %27 = vector.broadcast %cst_26 : f32 to vector<128x128xf32>
      %28 = arith.maximumf %26, %27 : vector<128x128xf32>
      %29 = vector.shape_cast %22 : vector<128x128xf32> to vector<16x8x128xf32>
      %cst_27 = arith.constant dense<0.000000e+00> : vector<16x128xf32>
      %30 = vector.multi_reduction <add>, %29, %cst_27 [1] : vector<16x8x128xf32> to vector<16x128xf32>
      %31 = vector.shape_cast %28 : vector<128x128xf32> to vector<16x8x128xf32>
      %cst_28 = arith.constant dense<0.000000e+00> : vector<16x128xf32>
      %32 = vector.multi_reduction <add>, %31, %cst_28 [1] : vector<16x8x128xf32> to vector<16x128xf32>
      %33 = arith.addf %30, %32 : vector<16x128xf32>
      %cst_29 = arith.constant 6.250000e-02 : f32
      %34 = vector.broadcast %cst_29 : f32 to vector<16x128xf32>
      %35 = arith.mulf %33, %34 : vector<16x128xf32>
      %36 = arith.truncf %35 : vector<16x128xf32> to vector<16x128xbf16>
      %c0_30 = arith.constant 0 : index
      %c0_31 = arith.constant 0 : index
      %37 = vector.load %arg6[%c0_30, %c0_31] : memref<128x128xbf16, #tpu.memory_space<vmem>>, vector<128x128xbf16>
      %cst_32 = arith.constant dense<0.000000e+00> : vector<16x128xf32>
      %38 = tpu.matmul %36, %37, %cst_32 {dimension_numbers = #tpu.dot_dimension_numbers<[1], [0], [0], [1], [0, 0, 1, 1], [], []>} : vector<16x128xbf16>, vector<128x128xbf16>, vector<16x128xf32> -> vector<16x128xf32>
      %c0_33 = arith.constant 0 : index
      %c0_34 = arith.constant 0 : index
      %39 = vector.load %arg7[%c0_33, %c0_34] : memref<1x128xf32, #tpu.memory_space<vmem>>, vector<1x128xf32>
      %40 = vector.broadcast %39 : vector<1x128xf32> to vector<16x128xf32>
      %41 = arith.addf %38, %40 : vector<16x128xf32>
      %c0_35 = arith.constant 0 : index
      %c0_36 = arith.constant 0 : index
      %42 = vector.load %arg8[%c0_35, %c0_36] : memref<16x128xf32, #tpu.memory_space<vmem>>, vector<16x128xf32>
      tpu.vector_store %arg8[%c0_35, %c0_36], %41 {strides = array<i32>} : memref<16x128xf32, #tpu.memory_space<vmem>>, vector<16x128xf32>,
    } else {
    }
    return
  }
  func.func @transform_0(%arg0: i32, %arg1: i32) -> (i32, i32) {
    %c0_i32 = arith.constant 0 : i32
    return %arg0, %arg1 : i32, i32
  }
  func.func @transform_1(%arg0: i32, %arg1: i32) -> (i32, i32) {
    %c0_i32 = arith.constant 0 : i32
    return %arg0, %arg1 : i32, i32
  }
  func.func @transform_2(%arg0: i32, %arg1: i32) -> (i32, i32) {
    %c0_i32 = arith.constant 0 : i32
    %c0_i32_0 = arith.constant 0 : i32
    %c0_i32_1 = arith.constant 0 : i32
    return %c0_i32, %c0_i32_0 : i32, i32
  }
  func.func @transform_3(%arg0: i32, %arg1: i32) -> (i32, i32) {
    %c0_i32 = arith.constant 0 : i32
    %c0_i32_0 = arith.constant 0 : i32
    %c0_i32_1 = arith.constant 0 : i32
    return %c0_i32, %c0_i32_0 : i32, i32
  }
  func.func @transform_4(%arg0: i32, %arg1: i32) -> (i32, i32) {
    %c0_i32 = arith.constant 0 : i32
    %c0_i32_0 = arith.constant 0 : i32
    %c0_i32_1 = arith.constant 0 : i32
    return %c0_i32, %c0_i32_0 : i32, i32
  }
  func.func @transform_5(%arg0: i32, %arg1: i32) -> (i32, i32) {
    %c0_i32 = arith.constant 0 : i32
    %c0_i32_0 = arith.constant 0 : i32
    %c0_i32_1 = arith.constant 0 : i32
    return %c0_i32, %c0_i32_0 : i32, i32
  }
  func.func @transform_6(%arg0: i32, %arg1: i32) -> (i32, i32) {
    %c0_i32 = arith.constant 0 : i32
    %c0_i32_0 = arith.constant 0 : i32
    return %arg0, %c0_i32 : i32, i32
  }
}

module attributes {stable_mosaic.version = 11 : i64} {
  func.func @vcm_kernel(%arg0: i32, %arg1: i32, %arg2: memref<128x256xbf16, #tpu.memory_space<vmem>>, %arg3: memref<128x256xbf16, #tpu.memory_space<vmem>>, %arg4: memref<256x128xbf16, #tpu.memory_space<vmem>>, %arg5: memref<1x128xf32, #tpu.memory_space<vmem>>, %arg6: memref<128x128xbf16, #tpu.memory_space<vmem>>, %arg7: memref<1x128xf32, #tpu.memory_space<vmem>>, %arg8: memref<16x128xf32, #tpu.memory_space<vmem>>, %arg9: memref<128x128xf32, #tpu.memory_space<vmem>>, %arg10: memref<128x128xf32, #tpu.memory_space<vmem>>) attributes {dimension_semantics = [#tpu.dimension_semantics<parallel>, #tpu.dimension_semantics<arbitrary>], iteration_bounds = array<i64: 1, 1>, scalar_prefetch = 0 : i64, scratch_operands = 2 : i64, tpu.core_type = #tpu.core_type<tc>, window_params = [{transform_indices = @transform_0, window_bounds = array<i64: 128, 256>}, {transform_indices = @transform_1, window_bounds = array<i64: 128, 256>}, {pipeline_mode = #tpu.pipeline_mode<synchronous>, transform_indices = @transform_2, window_bounds = array<i64: 256, 128>}, {pipeline_mode = #tpu.pipeline_mode<synchronous>, transform_indices = @transform_3, window_bounds = array<i64: 1, 128>}, {pipeline_mode = #tpu.pipeline_mode<synchronous>, transform_indices = @transform_4, window_bounds = array<i64: 128, 128>}, {pipeline_mode = #tpu.pipeline_mode<synchronous>, transform_indices = @transform_5, window_bounds = array<i64: 1, 128>}, {transform_indices = @transform_6, window_bounds = array<i64: 16, 128>}]} {
    %c0_i32 = arith.constant 0 : i32
    %0 = arith.cmpi eq, %arg1, %c0_i32 : i32
    %1 = arith.extui %0 : i1 to i32
    %c0_i32_0 = arith.constant 0 : i32
    %2 = arith.cmpi ne, %1, %c0_i32_0 : i32
    scf.if %2 {
      %cst_17 = arith.constant 0.000000e+00 : f32
      %17 = vector.broadcast %cst_17 : f32 to vector<128x128xf32>
      %c0_18 = arith.constant 0 : index
      %c0_19 = arith.constant 0 : index
      %18 = vector.load %arg9[%c0_18, %c0_19] : memref<128x128xf32, #tpu.memory_space<vmem>>, vector<128x128xf32>
      tpu.vector_store %arg9[%c0_18, %c0_19], %17 {strides = array<i32>} : memref<128x128xf32, #tpu.memory_space<vmem>>, vector<128x128xf32>,
      %cst_20 = arith.constant 0.000000e+00 : f32
      %19 = vector.broadcast %cst_20 : f32 to vector<128x128xf32>
      %c0_21 = arith.constant 0 : index
      %c0_22 = arith.constant 0 : index
      %20 = vector.load %arg10[%c0_21, %c0_22] : memref<128x128xf32, #tpu.memory_space<vmem>>, vector<128x128xf32>
      tpu.vector_store %arg10[%c0_21, %c0_22], %19 {strides = array<i32>} : memref<128x128xf32, #tpu.memory_space<vmem>>, vector<128x128xf32>,
    } else {
    }
    %c0 = arith.constant 0 : index
    %c0_1 = arith.constant 0 : index
    %3 = vector.load %arg4[%c0, %c0_1] : memref<256x128xbf16, #tpu.memory_space<vmem>>, vector<256x128xbf16>
    %c0_2 = arith.constant 0 : index
    %c0_3 = arith.constant 0 : index
    %4 = vector.load %arg9[%c0_2, %c0_3] : memref<128x128xf32, #tpu.memory_space<vmem>>, vector<128x128xf32>
    %c0_4 = arith.constant 0 : index
    %c0_5 = arith.constant 0 : index
    %5 = vector.load %arg2[%c0_4, %c0_5] : memref<128x256xbf16, #tpu.memory_space<vmem>>, vector<128x256xbf16>
    %cst = arith.constant dense<0.000000e+00> : vector<128x128xf32>
    %6 = tpu.matmul %5, %3, %cst {dimension_numbers = #tpu.dot_dimension_numbers<[1], [0], [0], [1], [0, 0, 1, 1], [], []>} : vector<128x256xbf16>, vector<256x128xbf16>, vector<128x128xf32> -> vector<128x128xf32>
    %7 = arith.addf %4, %6 : vector<128x128xf32>
    %c0_6 = arith.constant 0 : index
    %c0_7 = arith.constant 0 : index
    %8 = vector.load %arg9[%c0_6, %c0_7] : memref<128x128xf32, #tpu.memory_space<vmem>>, vector<128x128xf32>
    tpu.vector_store %arg9[%c0_6, %c0_7], %7 {strides = array<i32>} : memref<128x128xf32, #tpu.memory_space<vmem>>, vector<128x128xf32>,
    %c0_8 = arith.constant 0 : index
    %c0_9 = arith.constant 0 : index
    %9 = vector.load %arg10[%c0_8, %c0_9] : memref<128x128xf32, #tpu.memory_space<vmem>>, vector<128x128xf32>
    %c0_10 = arith.constant 0 : index
    %c0_11 = arith.constant 0 : index
    %10 = vector.load %arg3[%c0_10, %c0_11] : memref<128x256xbf16, #tpu.memory_space<vmem>>, vector<128x256xbf16>
    %cst_12 = arith.constant dense<0.000000e+00> : vector<128x128xf32>
    %11 = tpu.matmul %10, %3, %cst_12 {dimension_numbers = #tpu.dot_dimension_numbers<[1], [0], [0], [1], [0, 0, 1, 1], [], []>} : vector<128x256xbf16>, vector<256x128xbf16>, vector<128x128xf32> -> vector<128x128xf32>
    %12 = arith.addf %9, %11 : vector<128x128xf32>
    %c0_13 = arith.constant 0 : index
    %c0_14 = arith.constant 0 : index
    %13 = vector.load %arg10[%c0_13, %c0_14] : memref<128x128xf32, #tpu.memory_space<vmem>>, vector<128x128xf32>
    tpu.vector_store %arg10[%c0_13, %c0_14], %12 {strides = array<i32>} : memref<128x128xf32, #tpu.memory_space<vmem>>, vector<128x128xf32>,
    %c0_i32_15 = arith.constant 0 : i32
    %14 = arith.cmpi eq, %arg1, %c0_i32_15 : i32
    %15 = arith.extui %14 : i1 to i32
    %c0_i32_16 = arith.constant 0 : i32
    %16 = arith.cmpi ne, %15, %c0_i32_16 : i32
    scf.if %16 {
      %c0_17 = arith.constant 0 : index
      %c0_18 = arith.constant 0 : index
      %17 = vector.load %arg9[%c0_17, %c0_18] : memref<128x128xf32, #tpu.memory_space<vmem>>, vector<128x128xf32>
      %c0_19 = arith.constant 0 : index
      %c0_20 = arith.constant 0 : index
      %18 = vector.load %arg5[%c0_19, %c0_20] : memref<1x128xf32, #tpu.memory_space<vmem>>, vector<1x128xf32>
      %19 = vector.broadcast %18 : vector<1x128xf32> to vector<128x128xf32>
      %20 = arith.addf %17, %19 : vector<128x128xf32>
      %cst_21 = arith.constant 0.000000e+00 : f32
      %21 = vector.broadcast %cst_21 : f32 to vector<128x128xf32>
      %22 = arith.maximumf %20, %21 : vector<128x128xf32>
      %c0_22 = arith.constant 0 : index
      %c0_23 = arith.constant 0 : index
      %23 = vector.load %arg10[%c0_22, %c0_23] : memref<128x128xf32, #tpu.memory_space<vmem>>, vector<128x128xf32>
      %c0_24 = arith.constant 0 : index
      %c0_25 = arith.constant 0 : index
      %24 = vector.load %arg5[%c0_24, %c0_25] : memref<1x128xf32, #tpu.memory_space<vmem>>, vector<1x128xf32>
      %25 = vector.broadcast %24 : vector<1x128xf32> to vector<128x128xf32>
      %26 = arith.addf %23, %25 : vector<128x128xf32>
      %cst_26 = arith.constant 0.000000e+00 : f32
      %27 = vector.broadcast %cst_26 : f32 to vector<128x128xf32>
      %28 = arith.maximumf %26, %27 : vector<128x128xf32>
      %29 = vector.shape_cast %22 : vector<128x128xf32> to vector<16x8x128xf32>
      %cst_27 = arith.constant dense<0.000000e+00> : vector<16x128xf32>
      %30 = vector.multi_reduction <add>, %29, %cst_27 [1] : vector<16x8x128xf32> to vector<16x128xf32>
      %31 = vector.shape_cast %28 : vector<128x128xf32> to vector<16x8x128xf32>
      %cst_28 = arith.constant dense<0.000000e+00> : vector<16x128xf32>
      %32 = vector.multi_reduction <add>, %31, %cst_28 [1] : vector<16x8x128xf32> to vector<16x128xf32>
      %33 = arith.addf %30, %32 : vector<16x128xf32>
      %cst_29 = arith.constant 6.250000e-02 : f32
      %34 = vector.broadcast %cst_29 : f32 to vector<16x128xf32>
      %35 = arith.mulf %33, %34 : vector<16x128xf32>
      %36 = arith.truncf %35 : vector<16x128xf32> to vector<16x128xbf16>
      %c0_30 = arith.constant 0 : index
      %c0_31 = arith.constant 0 : index
      %37 = vector.load %arg6[%c0_30, %c0_31] : memref<128x128xbf16, #tpu.memory_space<vmem>>, vector<128x128xbf16>
      %cst_32 = arith.constant dense<0.000000e+00> : vector<16x128xf32>
      %38 = tpu.matmul %36, %37, %cst_32 {dimension_numbers = #tpu.dot_dimension_numbers<[1], [0], [0], [1], [0, 0, 1, 1], [], []>} : vector<16x128xbf16>, vector<128x128xbf16>, vector<16x128xf32> -> vector<16x128xf32>
      %c0_33 = arith.constant 0 : index
      %c0_34 = arith.constant 0 : index
      %39 = vector.load %arg7[%c0_33, %c0_34] : memref<1x128xf32, #tpu.memory_space<vmem>>, vector<1x128xf32>
      %40 = vector.broadcast %39 : vector<1x128xf32> to vector<16x128xf32>
      %41 = arith.addf %38, %40 : vector<16x128xf32>
      %c0_35 = arith.constant 0 : index
      %c0_36 = arith.constant 0 : index
      %42 = vector.load %arg8[%c0_35, %c0_36] : memref<16x128xf32, #tpu.memory_space<vmem>>, vector<16x128xf32>
      tpu.vector_store %arg8[%c0_35, %c0_36], %41 {strides = array<i32>} : memref<16x128xf32, #tpu.memory_space<vmem>>, vector<16x128xf32>,
    } else {
    }
    return
  }
  func.func @transform_0(%arg0: i32, %arg1: i32) -> (i32, i32) {
    %c0_i32 = arith.constant 0 : i32
    return %arg0, %arg1 : i32, i32
  }
  func.func @transform_1(%arg0: i32, %arg1: i32) -> (i32, i32) {
    %c0_i32 = arith.constant 0 : i32
    return %arg0, %arg1 : i32, i32
  }
  func.func @transform_2(%arg0: i32, %arg1: i32) -> (i32, i32) {
    %c0_i32 = arith.constant 0 : i32
    %c0_i32_0 = arith.constant 0 : i32
    %c0_i32_1 = arith.constant 0 : i32
    return %c0_i32, %c0_i32_0 : i32, i32
  }
  func.func @transform_3(%arg0: i32, %arg1: i32) -> (i32, i32) {
    %c0_i32 = arith.constant 0 : i32
    %c0_i32_0 = arith.constant 0 : i32
    %c0_i32_1 = arith.constant 0 : i32
    return %c0_i32, %c0_i32_0 : i32, i32
  }
  func.func @transform_4(%arg0: i32, %arg1: i32) -> (i32, i32) {
    %c0_i32 = arith.constant 0 : i32
    %c0_i32_0 = arith.constant 0 : i32
    %c0_i32_1 = arith.constant 0 : i32
    return %c0_i32, %c0_i32_0 : i32, i32
  }
  func.func @transform_5(%arg0: i32, %arg1: i32) -> (i32, i32) {
    %c0_i32 = arith.constant 0 : i32
    %c0_i32_0 = arith.constant 0 : i32
    %c0_i32_1 = arith.constant 0 : i32
    return %c0_i32, %c0_i32_0 : i32, i32
  }
  func.func @transform_6(%arg0: i32, %arg1: i32) -> (i32, i32) {
    %c0_i32 = arith.constant 0 : i32
    %c0_i32_0 = arith.constant 0 : i32
    return %arg0, %c0_i32 : i32, i32
  }
}

</mosaic_0001>

<llo_original>
// kernel: tpu_custom_call.1
$region0: #{tpu_custom_call.1}
  #allocation0 [shape = 'u32[]', space=smem, size = 0x4, offset = 0x4, fixed_abs, tag = 'smem constant byte address 0x4 - core index']
  #allocation1 [shape = 'u32[72,128]{1,0:T(1,128)}', space=vmem, size = 0x9000, scoped, tag = 'internal scratch']
  #allocation2 [shape = 'f32[128,128]{1,0:T(8,128)}', space=vmem, size = 0x10000, scoped, tag = 'scratch operand']
  #allocation3 [shape = 'f32[128,128]{1,0:T(8,128)}', space=vmem, size = 0x10000, scoped, tag = 'scratch operand']
  %s0 = inlined_call_operand.hbm [shape: bf16[128,256], index: 0, kind: input, shape index: {}]
  %s1 = inlined_call_operand.hbm [shape: bf16[128,256], index: 1, kind: input, shape index: {}]
  %s2 = inlined_call_operand.hbm [shape: bf16[256,128], index: 2, kind: input, shape index: {}]
  %s3 = inlined_call_operand.vmem [shape: f32[1,128], index: 3, kind: input, shape index: {}]
  %s4 = inlined_call_operand.hbm [shape: bf16[128,128], index: 4, kind: input, shape index: {}]
  %s5 = inlined_call_operand.vmem [shape: f32[1,128], index: 5, kind: input, shape index: {}]
  %s6 = inlined_call_operand.hbm [shape: f32[16,128], index: 6, kind: output, shape index: {}]
  %s7 = sld [smem:[#allocation0]]
  $region58: #{tpu_custom_call.1} parent=0
    _
  %s9 = ssub.s32 1, %s7
  %s10 = scalar_select 0, %s9, %s7
  $region1: #{tpu_custom_call.1} parent=0
    #allocation4 [shape = 'u8[65536]{0}', space=vmem, size = 0x10000, scoped, tag = 'input window, operand 0, single buffered']
    #allocation5 [shape = 's32[1]{0}', space=sflag, size = 0x4, scoped, tag = 'scoped memory for tpu_custom_call.1']
    #allocation6 [shape = 's32[1]{0}', space=sflag, size = 0x4, scoped, tag = 'scoped memory for tpu_custom_call.1']
    #allocation7 [shape = 'u8[65536]{0}', space=vmem, size = 0x10000, scoped, tag = 'input window, operand 1, single buffered']
    #allocation8 [shape = 's32[1]{0}', space=sflag, size = 0x4, scoped, tag = 'scoped memory for tpu_custom_call.1']
    #allocation9 [shape = 'u8[65536]{0}', space=vmem, size = 0x10000, scoped, tag = 'input window, operand 2, single buffered']
    #allocation10 [shape = 'u8[32768]{0}', space=vmem, size = 0x8000, scoped, tag = 'input window, operand 4, single buffered']
    #allocation11 [shape = 's32[1]{0}', space=sflag, size = 0x4, scoped, tag = 'scoped memory for tpu_custom_call.1']
    #allocation12 [shape = 'u8[8192]{0}', space=vmem, size = 0x2000, scoped, tag = 'output window, operand 0, single buffered']
    %11 = vsyncpa [#allocation5], 0
    %12 = vsyncpa [#allocation8], 0
    %13 = vsyncpa [#allocation11], 0
    %14 = vsyncpa [#allocation6], 0
    // Predicated region
    $region2: #{tpu_custom_call.1} parent=1 // pred_check
      _
    $region3: #{tpu_custom_call.1} parent=1 // pred_check_branch
      %16 = sbr.rel (0) target = $region5
    $region4: #{tpu_custom_call.1} parent=1 // pred_region
      %18 = vsyncadd [#allocation5], 0
      %s19 = sshll.u32 %s0, 4
      %s20 = int_to_ptr.hbm [resolvable:$true] %s19
      %s21 = sshll.u32 [#allocation4], 4
      %s22 = int_to_ptr.vmem [resolvable:$true] %s21
      %27 = dma.hbm_to_vmem [thread:$0]  %s20, 2048, %s22, [#allocation5], 128, 128, 8
    $region5: #{tpu_custom_call.1} parent=1 // pred_fallthru
      _
    // Predicated region
    $region6: #{tpu_custom_call.1} parent=1 // pred_check
      _
    $region7: #{tpu_custom_call.1} parent=1 // pred_check_branch
      %29 = sbr.rel (0) target = $region9
    $region8: #{tpu_custom_call.1} parent=1 // pred_region
      %31 = vsyncadd [#allocation8], 0
      %s32 = sshll.u32 %s1, 4
      %s33 = int_to_ptr.hbm [resolvable:$true] %s32
      %s34 = sshll.u32 [#allocation7], 4
      %s35 = int_to_ptr.vmem [resolvable:$true] %s34
      %40 = dma.hbm_to_vmem [thread:$0]  %s33, 2048, %s35, [#allocation8], 128, 128, 8
    $region9: #{tpu_custom_call.1} parent=1 // pred_fallthru
      _
    // Predicated region
    $region10: #{tpu_custom_call.1} parent=1 // pred_check
      _
    $region11: #{tpu_custom_call.1} parent=1 // pred_check_branch
      %42 = sbr.rel (0) target = $region13
    $region12: #{tpu_custom_call.1} parent=1 // pred_region
      %44 = vsyncadd [#allocation8], 0
      %s45 = sshll.u32 %s2, 4
      %s46 = int_to_ptr.hbm [resolvable:$true] %s45
      %s47 = sshll.u32 [#allocation9], 4
      %s48 = int_to_ptr.vmem [resolvable:$true] %s47
      %53 = dma.hbm_to_vmem [thread:$0]  %s46, 2048, %s48, [#allocation8], 64, 64, 4
    $region13: #{tpu_custom_call.1} parent=1 // pred_fallthru
      _
    // Predicated region
    $region14: #{tpu_custom_call.1} parent=1 // pred_check
      _
    $region15: #{tpu_custom_call.1} parent=1 // pred_check_branch
      %55 = sbr.rel (0) target = $region17
    $region16: #{tpu_custom_call.1} parent=1 // pred_region
      _
    $region17: #{tpu_custom_call.1} parent=1 // pred_fallthru
      _
    // Predicated region
    $region18: #{tpu_custom_call.1} parent=1 // pred_check
      _
    $region19: #{tpu_custom_call.1} parent=1 // pred_check_branch
      %57 = sbr.rel (0) target = $region21
    $region20: #{tpu_custom_call.1} parent=1 // pred_region
      %59 = vsyncadd [#allocation11], 0
      %s60 = sshll.u32 %s4, 4
      %s61 = int_to_ptr.hbm [resolvable:$true] %s60
      %s62 = sshll.u32 [#allocation10], 4
      %s63 = int_to_ptr.vmem [resolvable:$true] %s62
      %68 = dma.hbm_to_vmem [thread:$0]  %s61, 1024, %s63, [#allocation11], 64, 64, 4
    $region21: #{tpu_custom_call.1} parent=1 // pred_fallthru
      _
    // Predicated region
    $region22: #{tpu_custom_call.1} parent=1 // pred_check
      _
    $region23: #{tpu_custom_call.1} parent=1 // pred_check_branch
      %70 = sbr.rel (0) target = $region25
    $region24: #{tpu_custom_call.1} parent=1 // pred_region
      _
    $region25: #{tpu_custom_call.1} parent=1 // pred_fallthru
      _
    // Predicated region
    $region26: #{tpu_custom_call.1} parent=1 // pred_check
      _
    $region27: #{tpu_custom_call.1} parent=1 // pred_check_branch
      %72 = sbr.rel (0) target = $region29
    $region28: #{tpu_custom_call.1} parent=1 // pred_region
      %74 = dma.done [#allocation5], 2048
    $region29: #{tpu_custom_call.1} parent=1 // pred_fallthru
      _
    // Predicated region
    $region30: #{tpu_custom_call.1} parent=1 // pred_check
      _
    $region31: #{tpu_custom_call.1} parent=1 // pred_check_branch
      %76 = sbr.rel (0) target = $region33
    $region32: #{tpu_custom_call.1} parent=1 // pred_region
      %78 = dma.done [#allocation8], 2048
    $region33: #{tpu_custom_call.1} parent=1 // pred_fallthru
      _
    // Predicated region
    $region34: #{tpu_custom_call.1} parent=1 // pred_check
      _
    $region35: #{tpu_custom_call.1} parent=1 // pred_check_branch
      %80 = sbr.rel (0) target = $region37
    $region36: #{tpu_custom_call.1} parent=1 // pred_region
      %82 = dma.done [#allocation8], 2048
    $region37: #{tpu_custom_call.1} parent=1 // pred_fallthru
      _
    // Predicated region
    $region38: #{tpu_custom_call.1} parent=1 // pred_check
      _
    $region39: #{tpu_custom_call.1} parent=1 // pred_check_branch
      %84 = sbr.rel (0) target = $region41
    $region40: #{tpu_custom_call.1} parent=1 // pred_region
      %86 = dma.done [#allocation11], 1024
    $region41: #{tpu_custom_call.1} parent=1 // pred_fallthru
      _
    %p87 = scmp.eq.s32.totalorder 0, 0
    // Predicated region
    $region42: #{tpu_custom_call.1} parent=1 // pred_check
      %p88 = pneg %p87
    $region43: #{tpu_custom_call.1} parent=1 // pred_check_branch
      %90 = sbr.rel (%p88) target = $region45
    $region44: #{tpu_custom_call.1} parent=1 // pred_region
      %91 = vst [vmem:[#allocation2] sm:$0xff] 0.0
      %92 = vst [vmem:[#allocation2 + $0x8] sm:$0xff] 0.0
      %93 = vst [vmem:[#allocation2 + $0x10] sm:$0xff] 0.0
      %94 = vst [vmem:[#allocation2 + $0x18] sm:$0xff] 0.0
      %95 = vst [vmem:[#allocation2 + $0x20] sm:$0xff] 0.0
      %96 = vst [vmem:[#allocation2 + $0x28] sm:$0xff] 0.0
      %97 = vst [vmem:[#allocation2 + $0x30] sm:$0xff] 0.0
      %98 = vst [vmem:[#allocation2 + $0x38] sm:$0xff] 0.0
      %99 = vst [vmem:[#allocation2 + $0x40] sm:$0xff] 0.0
      %100 = vst [vmem:[#allocation2 + $0x48] sm:$0xff] 0.0
      %101 = vst [vmem:[#allocation2 + $0x50] sm:$0xff] 0.0
      %102 = vst [vmem:[#allocation2 + $0x58] sm:$0xff] 0.0
      %103 = vst [vmem:[#allocation2 + $0x60] sm:$0xff] 0.0
      %104 = vst [vmem:[#allocation2 + $0x68] sm:$0xff] 0.0
      %105 = vst [vmem:[#allocation2 + $0x70] sm:$0xff] 0.0
      %106 = vst [vmem:[#allocation2 + $0x78] sm:$0xff] 0.0
      %107 = vst [vmem:[#allocation3] sm:$0xff] 0.0
      %108 = vst [vmem:[#allocation3 + $0x8] sm:$0xff] 0.0
      %109 = vst [vmem:[#allocation3 + $0x10] sm:$0xff] 0.0
      %110 = vst [vmem:[#allocation3 + $0x18] sm:$0xff] 0.0
      %111 = vst [vmem:[#allocation3 + $0x20] sm:$0xff] 0.0
      %112 = vst [vmem:[#allocation3 + $0x28] sm:$0xff] 0.0
      %113 = vst [vmem:[#allocation3 + $0x30] sm:$0xff] 0.0
      %114 = vst [vmem:[#allocation3 + $0x38] sm:$0xff] 0.0
      %115 = vst [vmem:[#allocation3 + $0x40] sm:$0xff] 0.0
      %116 = vst [vmem:[#allocation3 + $0x48] sm:$0xff] 0.0
      %117 = vst [vmem:[#allocation3 + $0x50] sm:$0xff] 0.0
      %118 = vst [vmem:[#allocation3 + $0x58] sm:$0xff] 0.0
      %119 = vst [vmem:[#allocation3 + $0x60] sm:$0xff] 0.0
      %120 = vst [vmem:[#allocation3 + $0x68] sm:$0xff] 0.0
      %121 = vst [vmem:[#allocation3 + $0x70] sm:$0xff] 0.0
      %122 = vst [vmem:[#allocation3 + $0x78] sm:$0xff] 0.0
    $region45: #{tpu_custom_call.1} parent=1 // pred_fallthru
      _
    %v123 = vld [vmem:[#allocation9] sm:$0xf]
    %v124 = vld [vmem:[#allocation9 + $0x4] sm:$0xf]
    %v125 = vld [vmem:[#allocation9 + $0x8] sm:$0xf]
    %v126 = vld [vmem:[#allocation9 + $0xc] sm:$0xf]
    %v127 = vld [vmem:[#allocation9 + $0x10] sm:$0xf]
    %v128 = vld [vmem:[#allocation9 + $0x14] sm:$0xf]
    %v129 = vld [vmem:[#allocation9 + $0x18] sm:$0xf]
    %v130 = vld [vmem:[#allocation9 + $0x1c] sm:$0xf]
    %v131 = vld [vmem:[#allocation9 + $0x20] sm:$0xf]
    %v132 = vld [vmem:[#allocation9 + $0x24] sm:$0xf]
    %v133 = vld [vmem:[#allocation9 + $0x28] sm:$0xf]
    %v134 = vld [vmem:[#allocation9 + $0x2c] sm:$0xf]
    %v135 = vld [vmem:[#allocation9 + $0x30] sm:$0xf]
    %v136 = vld [vmem:[#allocation9 + $0x34] sm:$0xf]
    %v137 = vld [vmem:[#allocation9 + $0x38] sm:$0xf]
    %v138 = vld [vmem:[#allocation9 + $0x3c] sm:$0xf]
    %v139 = vld [vmem:[#allocation9 + $0x40] sm:$0xf]
    %v140 = vld [vmem:[#allocation9 + $0x44] sm:$0xf]
    %v141 = vld [vmem:[#allocation9 + $0x48] sm:$0xf]
    %v142 = vld [vmem:[#allocation9 + $0x4c] sm:$0xf]
    %v143 = vld [vmem:[#allocation9 + $0x50] sm:$0xf]
    %v144 = vld [vmem:[#allocation9 + $0x54] sm:$0xf]
    %v145 = vld [vmem:[#allocation9 + $0x58] sm:$0xf]
    %v146 = vld [vmem:[#allocation9 + $0x5c] sm:$0xf]
    %v147 = vld [vmem:[#allocation9 + $0x60] sm:$0xf]
    %v148 = vld [vmem:[#allocation9 + $0x64] sm:$0xf]
    %v149 = vld [vmem:[#allocation9 + $0x68] sm:$0xf]
    %v150 = vld [vmem:[#allocation9 + $0x6c] sm:$0xf]
    %v151 = vld [vmem:[#allocation9 + $0x70] sm:$0xf]
    %v152 = vld [vmem:[#allocation9 + $0x74] sm:$0xf]
    %v153 = vld [vmem:[#allocation9 + $0x78] sm:$0xf]
    %v154 = vld [vmem:[#allocation9 + $0x7c] sm:$0xf]
    %v155 = vld [vmem:[#allocation2] sm:$0xff]
    %v156 = vld [vmem:[#allocation2 + $0x8] sm:$0xff]
    %v157 = vld [vmem:[#allocation2 + $0x10] sm:$0xff]
    %v158 = vld [vmem:[#allocation2 + $0x18] sm:$0xff]
    %v159 = vld [vmem:[#allocation2 + $0x20] sm:$0xff]
    %v160 = vld [vmem:[#allocation2 + $0x28] sm:$0xff]
    %v161 = vld [vmem:[#allocation2 + $0x30] sm:$0xff]
    %v162 = vld [vmem:[#allocation2 + $0x38] sm:$0xff]
    %v163 = vld [vmem:[#allocation2 + $0x40] sm:$0xff]
    %v164 = vld [vmem:[#allocation2 + $0x48] sm:$0xff]
    %v165 = vld [vmem:[#allocation2 + $0x50] sm:$0xff]
    %v166 = vld [vmem:[#allocation2 + $0x58] sm:$0xff]
    %v167 = vld [vmem:[#allocation2 + $0x60] sm:$0xff]
    %v168 = vld [vmem:[#allocation2 + $0x68] sm:$0xff]
    %v169 = vld [vmem:[#allocation2 + $0x70] sm:$0xff]
    %v170 = vld [vmem:[#allocation2 + $0x78] sm:$0xff]
    %v171 = vld [vmem:[#allocation4] sm:$0xff]
    %v172 = vld [vmem:[#allocation4 + $0x8] sm:$0xff]
    %v173 = vld [vmem:[#allocation4 + $0x10] sm:$0xff]
    %v174 = vld [vmem:[#allocation4 + $0x18] sm:$0xff]
    %v175 = vld [vmem:[#allocation4 + $0x20] sm:$0xff]
    %v176 = vld [vmem:[#allocation4 + $0x28] sm:$0xff]
    %v177 = vld [vmem:[#allocation4 + $0x30] sm:$0xff]
    %v178 = vld [vmem:[#allocation4 + $0x38] sm:$0xff]
    %v179 = vld [vmem:[#allocation4 + $0x40] sm:$0xff]
    %v180 = vld [vmem:[#allocation4 + $0x48] sm:$0xff]
    %v181 = vld [vmem:[#allocation4 + $0x50] sm:$0xff]
    %v182 = vld [vmem:[#allocation4 + $0x58] sm:$0xff]
    %v183 = vld [vmem:[#allocation4 + $0x60] sm:$0xff]
    %v184 = vld [vmem:[#allocation4 + $0x68] sm:$0xff]
    %v185 = vld [vmem:[#allocation4 + $0x70] sm:$0xff]
    %v186 = vld [vmem:[#allocation4 + $0x78] sm:$0xff]
    %v203 = vunpack.c.l.b16 %v171
    %v204 = vunpack.c.h.b16 %v171
    %v205 = vunpack.c.l.b16 %v172
    %v206 = vunpack.c.h.b16 %v172
    %v207 = vunpack.c.l.b16 %v173
    %v208 = vunpack.c.h.b16 %v173
    %v209 = vunpack.c.l.b16 %v174
    %v210 = vunpack.c.h.b16 %v174
    %v211 = vunpack.c.l.b16 %v175
    %v212 = vunpack.c.h.b16 %v175
    %v213 = vunpack.c.l.b16 %v176
    %v214 = vunpack.c.h.b16 %v176
    %v215 = vunpack.c.l.b16 %v177
    %v216 = vunpack.c.h.b16 %v177
    %v217 = vunpack.c.l.b16 %v178
    %v218 = vunpack.c.h.b16 %v178
    %v219 = vunpack.c.l.b16 %v179
    %v220 = vunpack.c.h.b16 %v179
    %v221 = vunpack.c.l.b16 %v180
    %v222 = vunpack.c.h.b16 %v180
    %v223 = vunpack.c.l.b16 %v181
    %v224 = vunpack.c.h.b16 %v181
    %v225 = vunpack.c.l.b16 %v182
    %v226 = vunpack.c.h.b16 %v182
    %v227 = vunpack.c.l.b16 %v183
    %v228 = vunpack.c.h.b16 %v183
    %v229 = vunpack.c.l.b16 %v184
    %v230 = vunpack.c.h.b16 %v184
    %v231 = vunpack.c.l.b16 %v185
    %v232 = vunpack.c.h.b16 %v185
    %v233 = vunpack.c.l.b16 %v186
    %v234 = vunpack.c.h.b16 %v186
    %v235 = vpack.c.b16 %v205, %v203
    %v236 = vpack.c.b16 %v206, %v204
    %v237 = vpack.c.b16 %v209, %v207
    %v238 = vpack.c.b16 %v210, %v208
    %v239 = vpack.c.b16 %v213, %v211
    %v240 = vpack.c.b16 %v214, %v212
    %v241 = vpack.c.b16 %v217, %v215
    %v242 = vpack.c.b16 %v218, %v216
    %v243 = vpack.c.b16 %v221, %v219
    %v244 = vpack.c.b16 %v222, %v220
    %v245 = vpack.c.b16 %v225, %v223
    %v246 = vpack.c.b16 %v226, %v224
    %v247 = vpack.c.b16 %v229, %v227
    %v248 = vpack.c.b16 %v230, %v228
    %v249 = vpack.c.b16 %v233, %v231
    %v250 = vpack.c.b16 %v234, %v232
    %v299 = vunpack.c.l.b16 %v123
    %v300 = vunpack.c.l.b16 %v124
    %v301 = vunpack.c.l.b16 %v125
    %v302 = vunpack.c.l.b16 %v126
    %v303 = vunpack.c.l.b16 %v127
    %v304 = vunpack.c.l.b16 %v128
    %v305 = vunpack.c.l.b16 %v129
    %v306 = vunpack.c.l.b16 %v130
    %v307 = vunpack.c.l.b16 %v131
    %v308 = vunpack.c.l.b16 %v132
    %v309 = vunpack.c.l.b16 %v133
    %v310 = vunpack.c.l.b16 %v134
    %v311 = vunpack.c.l.b16 %v135
    %v312 = vunpack.c.l.b16 %v136
    %v313 = vunpack.c.l.b16 %v137
    %v314 = vunpack.c.l.b16 %v138
    %v315 = vunpack.c.l.b16 %v139
    %v316 = vunpack.c.l.b16 %v140
    %v317 = vunpack.c.l.b16 %v141
    %v318 = vunpack.c.l.b16 %v142
    %v319 = vunpack.c.l.b16 %v143
    %v320 = vunpack.c.l.b16 %v144
    %v321 = vunpack.c.l.b16 %v145
    %v322 = vunpack.c.l.b16 %v146
    %v323 = vunpack.c.l.b16 %v147
    %v324 = vunpack.c.l.b16 %v148
    %v325 = vunpack.c.l.b16 %v149
    %v326 = vunpack.c.l.b16 %v150
    %v327 = vunpack.c.l.b16 %v151
    %v328 = vunpack.c.l.b16 %v152
    %v329 = vunpack.c.l.b16 %v153
    %v330 = vunpack.c.l.b16 %v154
    %v331 = vpack.c.b16 %v300, %v299
    %v332 = vpack.c.b16 %v302, %v301
    %v333 = vpack.c.b16 %v304, %v303
    %v334 = vpack.c.b16 %v306, %v305
    %v335 = vpack.c.b16 %v308, %v307
    %v336 = vpack.c.b16 %v310, %v309
    %v337 = vpack.c.b16 %v312, %v311
    %v338 = vpack.c.b16 %v314, %v313
    %v339 = vpack.c.b16 %v316, %v315
    %v340 = vpack.c.b16 %v318, %v317
    %v341 = vpack.c.b16 %v320, %v319
    %v342 = vpack.c.b16 %v322, %v321
    %v343 = vpack.c.b16 %v324, %v323
    %v344 = vpack.c.b16 %v326, %v325
    %v345 = vpack.c.b16 %v328, %v327
    %v346 = vpack.c.b16 %v330, %v329
    %363 = vmatpush.bf16.msra.mxu0 %v338
    %364 = vmatpush.bf16.msra.mxu0 %v337
    %365 = vmatpush.bf16.msra.mxu0 %v336
    %366 = vmatpush.bf16.msra.mxu0 %v335
    %367 = vmatpush.bf16.msra.mxu0 %v334
    %368 = vmatpush.bf16.msra.mxu0 %v333
    %369 = vmatpush.bf16.msra.mxu0 %v332
    %370 = vmatpush.bf16.msra.mxu0 %v331
    %371 = vmatmul.bf16.gmra.mxu0 %v235
    %v372 = vpop.f32.mrf.mxu0
    %v373 = vadd.f32 0.0, %v372
    %v374 = vpop.f32.mrf.mxu0
    %v375 = vadd.f32 0.0, %v374
    %376 = vmatmul.bf16.gmra.mxu0 %v237
    %v377 = vpop.f32.mrf.mxu0
    %v378 = vadd.f32 0.0, %v377
    %v379 = vpop.f32.mrf.mxu0
    %v380 = vadd.f32 0.0, %v379
    %381 = vmatmul.bf16.gmra.mxu0 %v239
    %v382 = vpop.f32.mrf.mxu0
    %v383 = vadd.f32 0.0, %v382
    %v384 = vpop.f32.mrf.mxu0
    %v385 = vadd.f32 0.0, %v384
    %386 = vmatmul.bf16.gmra.mxu0 %v241
    %v387 = vpop.f32.mrf.mxu0
    %v388 = vadd.f32 0.0, %v387
    %v389 = vpop.f32.mrf.mxu0
    %v390 = vadd.f32 0.0, %v389
    %391 = vmatmul.bf16.gmra.mxu0 %v243
    %v392 = vpop.f32.mrf.mxu0
    %v393 = vadd.f32 0.0, %v392
    %v394 = vpop.f32.mrf.mxu0
    %v395 = vadd.f32 0.0, %v394
    %396 = vmatmul.bf16.gmra.mxu0 %v245
    %v397 = vpop.f32.mrf.mxu0
    %v398 = vadd.f32 0.0, %v397
    %v399 = vpop.f32.mrf.mxu0
    %v400 = vadd.f32 0.0, %v399
    %401 = vmatmul.bf16.gmra.mxu0 %v247
    %v402 = vpop.f32.mrf.mxu0
    %v403 = vadd.f32 0.0, %v402
    %v404 = vpop.f32.mrf.mxu0
    %v405 = vadd.f32 0.0, %v404
    %406 = vmatmul.bf16.gmra.mxu0 %v249
    %v407 = vpop.f32.mrf.mxu0
    %v408 = vadd.f32 0.0, %v407
    %v409 = vpop.f32.mrf.mxu0
    %v410 = vadd.f32 0.0, %v409
    %411 = vdwg.mxu0
    %412 = vmatpush.bf16.msra.mxu0 %v346
    %413 = vmatpush.bf16.msra.mxu0 %v345
    %414 = vmatpush.bf16.msra.mxu0 %v344
    %415 = vmatpush.bf16.msra.mxu0 %v343
    %416 = vmatpush.bf16.msra.mxu0 %v342
    %417 = vmatpush.bf16.msra.mxu0 %v341
    %418 = vmatpush.bf16.msra.mxu0 %v340
    %419 = vmatpush.bf16.msra.mxu0 %v339
    %420 = vmatmul.bf16.gmra.mxu0 %v236
    %v421 = vpop.f32.mrf.mxu0
    %v422 = vadd.f32 %v373, %v421
    %v423 = vpop.f32.mrf.mxu0
    %v424 = vadd.f32 %v375, %v423
    %425 = vmatmul.bf16.gmra.mxu0 %v238
    %v426 = vpop.f32.mrf.mxu0
    %v427 = vadd.f32 %v378, %v426
    %v428 = vpop.f32.mrf.mxu0
    %v429 = vadd.f32 %v380, %v428
    %430 = vmatmul.bf16.gmra.mxu0 %v240
    %v431 = vpop.f32.mrf.mxu0
    %v432 = vadd.f32 %v383, %v431
    %v433 = vpop.f32.mrf.mxu0
    %v434 = vadd.f32 %v385, %v433
    %435 = vmatmul.bf16.gmra.mxu0 %v242
    %v436 = vpop.f32.mrf.mxu0
    %v437 = vadd.f32 %v388, %v436
    %v438 = vpop.f32.mrf.mxu0
    %v439 = vadd.f32 %v390, %v438
    %440 = vmatmul.bf16.gmra.mxu0 %v244
    %v441 = vpop.f32.mrf.mxu0
    %v442 = vadd.f32 %v393, %v441
    %v443 = vpop.f32.mrf.mxu0
    %v444 = vadd.f32 %v395, %v443
    %445 = vmatmul.bf16.gmra.mxu0 %v246
    %v446 = vpop.f32.mrf.mxu0
    %v447 = vadd.f32 %v398, %v446
    %v448 = vpop.f32.mrf.mxu0
    %v449 = vadd.f32 %v400, %v448
    %450 = vmatmul.bf16.gmra.mxu0 %v248
    %v451 = vpop.f32.mrf.mxu0
    %v452 = vadd.f32 %v403, %v451
    %v453 = vpop.f32.mrf.mxu0
    %v454 = vadd.f32 %v405, %v453
    %455 = vmatmul.bf16.gmra.mxu0 %v250
    %v456 = vpop.f32.mrf.mxu0
    %v457 = vadd.f32 %v408, %v456
    %v458 = vpop.f32.mrf.mxu0
    %v459 = vadd.f32 %v410, %v458
    %460 = vdwg.mxu0
    %v461 = vadd.f32 %v155, %v422
    %v462 = vadd.f32 %v156, %v424
    %v463 = vadd.f32 %v157, %v427
    %v464 = vadd.f32 %v158, %v429
    %v465 = vadd.f32 %v159, %v432
    %v466 = vadd.f32 %v160, %v434
    %v467 = vadd.f32 %v161, %v437
    %v468 = vadd.f32 %v162, %v439
    %v469 = vadd.f32 %v163, %v442
    %v470 = vadd.f32 %v164, %v444
    %v471 = vadd.f32 %v165, %v447
    %v472 = vadd.f32 %v166, %v449
    %v473 = vadd.f32 %v167, %v452
    %v474 = vadd.f32 %v168, %v454
    %v475 = vadd.f32 %v169, %v457
    %v476 = vadd.f32 %v170, %v459
    %477 = vst [vmem:[#allocation2] sm:$0xff] %v461
    %478 = vst [vmem:[#allocation2 + $0x8] sm:$0xff] %v462
    %479 = vst [vmem:[#allocation2 + $0x10] sm:$0xff] %v463
    %480 = vst [vmem:[#allocation2 + $0x18] sm:$0xff] %v464
    %481 = vst [vmem:[#allocation2 + $0x20] sm:$0xff] %v465
    %482 = vst [vmem:[#allocation2 + $0x28] sm:$0xff] %v466
    %483 = vst [vmem:[#allocation2 + $0x30] sm:$0xff] %v467
    %484 = vst [vmem:[#allocation2 + $0x38] sm:$0xff] %v468
    %485 = vst [vmem:[#allocation2 + $0x40] sm:$0xff] %v469
    %486 = vst [vmem:[#allocation2 + $0x48] sm:$0xff] %v470
    %487 = vst [vmem:[#allocation2 + $0x50] sm:$0xff] %v471
    %488 = vst [vmem:[#allocation2 + $0x58] sm:$0xff] %v472
    %489 = vst [vmem:[#allocation2 + $0x60] sm:$0xff] %v473
    %490 = vst [vmem:[#allocation2 + $0x68] sm:$0xff] %v474
    %491 = vst [vmem:[#allocation2 + $0x70] sm:$0xff] %v475
    %492 = vst [vmem:[#allocation2 + $0x78] sm:$0xff] %v476
    %v493 = vld [vmem:[#allocation3] sm:$0xff]
    %v494 = vld [vmem:[#allocation3 + $0x8] sm:$0xff]
    %v495 = vld [vmem:[#allocation3 + $0x10] sm:$0xff]
    %v496 = vld [vmem:[#allocation3 + $0x18] sm:$0xff]
    %v497 = vld [vmem:[#allocation3 + $0x20] sm:$0xff]
    %v498 = vld [vmem:[#allocation3 + $0x28] sm:$0xff]
    %v499 = vld [vmem:[#allocation3 + $0x30] sm:$0xff]
    %v500 = vld [vmem:[#allocation3 + $0x38] sm:$0xff]
    %v501 = vld [vmem:[#allocation3 + $0x40] sm:$0xff]
    %v502 = vld [vmem:[#allocation3 + $0x48] sm:$0xff]
    %v503 = vld [vmem:[#allocation3 + $0x50] sm:$0xff]
    %v504 = vld [vmem:[#allocation3 + $0x58] sm:$0xff]
    %v505 = vld [vmem:[#allocation3 + $0x60] sm:$0xff]
    %v506 = vld [vmem:[#allocation3 + $0x68] sm:$0xff]
    %v507 = vld [vmem:[#allocation3 + $0x70] sm:$0xff]
    %v508 = vld [vmem:[#allocation3 + $0x78] sm:$0xff]
    %v509 = vld [vmem:[#allocation7] sm:$0xff]
    %v510 = vld [vmem:[#allocation7 + $0x8] sm:$0xff]
    %v511 = vld [vmem:[#allocation7 + $0x10] sm:$0xff]
    %v512 = vld [vmem:[#allocation7 + $0x18] sm:$0xff]
    %v513 = vld [vmem:[#allocation7 + $0x20] sm:$0xff]
    %v514 = vld [vmem:[#allocation7 + $0x28] sm:$0xff]
    %v515 = vld [vmem:[#allocation7 + $0x30] sm:$0xff]
    %v516 = vld [vmem:[#allocation7 + $0x38] sm:$0xff]
    %v517 = vld [vmem:[#allocation7 + $0x40] sm:$0xff]
    %v518 = vld [vmem:[#allocation7 + $0x48] sm:$0xff]
    %v519 = vld [vmem:[#allocation7 + $0x50] sm:$0xff]
    %v520 = vld [vmem:[#allocation7 + $0x58] sm:$0xff]
    %v521 = vld [vmem:[#allocation7 + $0x60] sm:$0xff]
    %v522 = vld [vmem:[#allocation7 + $0x68] sm:$0xff]
    %v523 = vld [vmem:[#allocation7 + $0x70] sm:$0xff]
    %v524 = vld [vmem:[#allocation7 + $0x78] sm:$0xff]
    %v541 = vunpack.c.l.b16 %v509
    %v542 = vunpack.c.h.b16 %v509
    %v543 = vunpack.c.l.b16 %v510
    %v544 = vunpack.c.h.b16 %v510
    %v545 = vunpack.c.l.b16 %v511
    %v546 = vunpack.c.h.b16 %v511
    %v547 = vunpack.c.l.b16 %v512
    %v548 = vunpack.c.h.b16 %v512
    %v549 = vunpack.c.l.b16 %v513
    %v550 = vunpack.c.h.b16 %v513
    %v551 = vunpack.c.l.b16 %v514
    %v552 = vunpack.c.h.b16 %v514
    %v553 = vunpack.c.l.b16 %v515
    %v554 = vunpack.c.h.b16 %v515
    %v555 = vunpack.c.l.b16 %v516
    %v556 = vunpack.c.h.b16 %v516
    %v557 = vunpack.c.l.b16 %v517
    %v558 = vunpack.c.h.b16 %v517
    %v559 = vunpack.c.l.b16 %v518
    %v560 = vunpack.c.h.b16 %v518
    %v561 = vunpack.c.l.b16 %v519
    %v562 = vunpack.c.h.b16 %v519
    %v563 = vunpack.c.l.b16 %v520
    %v564 = vunpack.c.h.b16 %v520
    %v565 = vunpack.c.l.b16 %v521
    %v566 = vunpack.c.h.b16 %v521
    %v567 = vunpack.c.l.b16 %v522
    %v568 = vunpack.c.h.b16 %v522
    %v569 = vunpack.c.l.b16 %v523
    %v570 = vunpack.c.h.b16 %v523
    %v571 = vunpack.c.l.b16 %v524
    %v572 = vunpack.c.h.b16 %v524
    %v573 = vpack.c.b16 %v543, %v541
    %v574 = vpack.c.b16 %v544, %v542
    %v575 = vpack.c.b16 %v547, %v545
    %v576 = vpack.c.b16 %v548, %v546
    %v577 = vpack.c.b16 %v551, %v549
    %v578 = vpack.c.b16 %v552, %v550
    %v579 = vpack.c.b16 %v555, %v553
    %v580 = vpack.c.b16 %v556, %v554
    %v581 = vpack.c.b16 %v559, %v557
    %v582 = vpack.c.b16 %v560, %v558
    %v583 = vpack.c.b16 %v563, %v561
    %v584 = vpack.c.b16 %v564, %v562
    %v585 = vpack.c.b16 %v567, %v565
    %v586 = vpack.c.b16 %v568, %v566
    %v587 = vpack.c.b16 %v571, %v569
    %v588 = vpack.c.b16 %v572, %v570
    %605 = vmatpush.bf16.msra.mxu0 %v338
    %606 = vmatpush.bf16.msra.mxu0 %v337
    %607 = vmatpush.bf16.msra.mxu0 %v336
    %608 = vmatpush.bf16.msra.mxu0 %v335
    %609 = vmatpush.bf16.msra.mxu0 %v334
    %610 = vmatpush.bf16.msra.mxu0 %v333
    %611 = vmatpush.bf16.msra.mxu0 %v332
    %612 = vmatpush.bf16.msra.mxu0 %v331
    %613 = vmatmul.bf16.gmra.mxu0 %v573
    %v614 = vpop.f32.mrf.mxu0
    %v615 = vadd.f32 0.0, %v614
    %v616 = vpop.f32.mrf.mxu0
    %v617 = vadd.f32 0.0, %v616
    %618 = vmatmul.bf16.gmra.mxu0 %v575
    %v619 = vpop.f32.mrf.mxu0
    %v620 = vadd.f32 0.0, %v619
    %v621 = vpop.f32.mrf.mxu0
    %v622 = vadd.f32 0.0, %v621
    %623 = vmatmul.bf16.gmra.mxu0 %v577
    %v624 = vpop.f32.mrf.mxu0
    %v625 = vadd.f32 0.0, %v624
    %v626 = vpop.f32.mrf.mxu0
    %v627 = vadd.f32 0.0, %v626
    %628 = vmatmul.bf16.gmra.mxu0 %v579
    %v629 = vpop.f32.mrf.mxu0
    %v630 = vadd.f32 0.0, %v629
    %v631 = vpop.f32.mrf.mxu0
    %v632 = vadd.f32 0.0, %v631
    %633 = vmatmul.bf16.gmra.mxu0 %v581
    %v634 = vpop.f32.mrf.mxu0
    %v635 = vadd.f32 0.0, %v634
    %v636 = vpop.f32.mrf.mxu0
    %v637 = vadd.f32 0.0, %v636
    %638 = vmatmul.bf16.gmra.mxu0 %v583
    %v639 = vpop.f32.mrf.mxu0
    %v640 = vadd.f32 0.0, %v639
    %v641 = vpop.f32.mrf.mxu0
    %v642 = vadd.f32 0.0, %v641
    %643 = vmatmul.bf16.gmra.mxu0 %v585
    %v644 = vpop.f32.mrf.mxu0
    %v645 = vadd.f32 0.0, %v644
    %v646 = vpop.f32.mrf.mxu0
    %v647 = vadd.f32 0.0, %v646
    %648 = vmatmul.bf16.gmra.mxu0 %v587
    %v649 = vpop.f32.mrf.mxu0
    %v650 = vadd.f32 0.0, %v649
    %v651 = vpop.f32.mrf.mxu0
    %v652 = vadd.f32 0.0, %v651
    %653 = vdwg.mxu0
    %654 = vmatpush.bf16.msra.mxu0 %v346
    %655 = vmatpush.bf16.msra.mxu0 %v345
    %656 = vmatpush.bf16.msra.mxu0 %v344
    %657 = vmatpush.bf16.msra.mxu0 %v343
    %658 = vmatpush.bf16.msra.mxu0 %v342
    %659 = vmatpush.bf16.msra.mxu0 %v341
    %660 = vmatpush.bf16.msra.mxu0 %v340
    %661 = vmatpush.bf16.msra.mxu0 %v339
    %662 = vmatmul.bf16.gmra.mxu0 %v574
    %v663 = vpop.f32.mrf.mxu0
    %v664 = vadd.f32 %v615, %v663
    %v665 = vpop.f32.mrf.mxu0
    %v666 = vadd.f32 %v617, %v665
    %667 = vmatmul.bf16.gmra.mxu0 %v576
    %v668 = vpop.f32.mrf.mxu0
    %v669 = vadd.f32 %v620, %v668
    %v670 = vpop.f32.mrf.mxu0
    %v671 = vadd.f32 %v622, %v670
    %672 = vmatmul.bf16.gmra.mxu0 %v578
    %v673 = vpop.f32.mrf.mxu0
    %v674 = vadd.f32 %v625, %v673
    %v675 = vpop.f32.mrf.mxu0
    %v676 = vadd.f32 %v627, %v675
    %677 = vmatmul.bf16.gmra.mxu0 %v580
    %v678 = vpop.f32.mrf.mxu0
    %v679 = vadd.f32 %v630, %v678
    %v680 = vpop.f32.mrf.mxu0
    %v681 = vadd.f32 %v632, %v680
    %682 = vmatmul.bf16.gmra.mxu0 %v582
    %v683 = vpop.f32.mrf.mxu0
    %v684 = vadd.f32 %v635, %v683
    %v685 = vpop.f32.mrf.mxu0
    %v686 = vadd.f32 %v637, %v685
    %687 = vmatmul.bf16.gmra.mxu0 %v584
    %v688 = vpop.f32.mrf.mxu0
    %v689 = vadd.f32 %v640, %v688
    %v690 = vpop.f32.mrf.mxu0
    %v691 = vadd.f32 %v642, %v690
    %692 = vmatmul.bf16.gmra.mxu0 %v586
    %v693 = vpop.f32.mrf.mxu0
    %v694 = vadd.f32 %v645, %v693
    %v695 = vpop.f32.mrf.mxu0
    %v696 = vadd.f32 %v647, %v695
    %697 = vmatmul.bf16.gmra.mxu0 %v588
    %v698 = vpop.f32.mrf.mxu0
    %v699 = vadd.f32 %v650, %v698
    %v700 = vpop.f32.mrf.mxu0
    %v701 = vadd.f32 %v652, %v700
    %702 = vdwg.mxu0
    %v703 = vadd.f32 %v493, %v664
    %v704 = vadd.f32 %v494, %v666
    %v705 = vadd.f32 %v495, %v669
    %v706 = vadd.f32 %v496, %v671
    %v707 = vadd.f32 %v497, %v674
    %v708 = vadd.f32 %v498, %v676
    %v709 = vadd.f32 %v499, %v679
    %v710 = vadd.f32 %v500, %v681
    %v711 = vadd.f32 %v501, %v684
    %v712 = vadd.f32 %v502, %v686
    %v713 = vadd.f32 %v503, %v689
    %v714 = vadd.f32 %v504, %v691
    %v715 = vadd.f32 %v505, %v694
    %v716 = vadd.f32 %v506, %v696
    %v717 = vadd.f32 %v507, %v699
    %v718 = vadd.f32 %v508, %v701
    %719 = vst [vmem:[#allocation3] sm:$0xff] %v703
    %720 = vst [vmem:[#allocation3 + $0x8] sm:$0xff] %v704
    %721 = vst [vmem:[#allocation3 + $0x10] sm:$0xff] %v705
    %722 = vst [vmem:[#allocation3 + $0x18] sm:$0xff] %v706
    %723 = vst [vmem:[#allocation3 + $0x20] sm:$0xff] %v707
    %724 = vst [vmem:[#allocation3 + $0x28] sm:$0xff] %v708
    %725 = vst [vmem:[#allocation3 + $0x30] sm:$0xff] %v709
    %726 = vst [vmem:[#allocation3 + $0x38] sm:$0xff] %v710
    %727 = vst [vmem:[#allocation3 + $0x40] sm:$0xff] %v711
    %728 = vst [vmem:[#allocation3 + $0x48] sm:$0xff] %v712
    %729 = vst [vmem:[#allocation3 + $0x50] sm:$0xff] %v713
    %730 = vst [vmem:[#allocation3 + $0x58] sm:$0xff] %v714
    %731 = vst [vmem:[#allocation3 + $0x60] sm:$0xff] %v715
    %732 = vst [vmem:[#allocation3 + $0x68] sm:$0xff] %v716
    %733 = vst [vmem:[#allocation3 + $0x70] sm:$0xff] %v717
    %734 = vst [vmem:[#allocation3 + $0x78] sm:$0xff] %v718
    // Predicated region
    $region46: #{tpu_custom_call.1} parent=1 // pred_check
      %p735 = pneg %p87
    $region47: #{tpu_custom_call.1} parent=1 // pred_check_branch
      %737 = sbr.rel (%p735) target = $region49
    $region48: #{tpu_custom_call.1} parent=1 // pred_region
      %v738 = vld [vmem:[#allocation2] sm:$0xff]
      %v739 = vld [vmem:[#allocation2 + $0x8] sm:$0xff]
      %v740 = vld [vmem:[#allocation2 + $0x10] sm:$0xff]
      %v741 = vld [vmem:[#allocation2 + $0x18] sm:$0xff]
      %v742 = vld [vmem:[#allocation2 + $0x20] sm:$0xff]
      %v743 = vld [vmem:[#allocation2 + $0x28] sm:$0xff]
      %v744 = vld [vmem:[#allocation2 + $0x30] sm:$0xff]
      %v745 = vld [vmem:[#allocation2 + $0x38] sm:$0xff]
      %v746 = vld [vmem:[#allocation2 + $0x40] sm:$0xff]
      %v747 = vld [vmem:[#allocation2 + $0x48] sm:$0xff]
      %v748 = vld [vmem:[#allocation2 + $0x50] sm:$0xff]
      %v749 = vld [vmem:[#allocation2 + $0x58] sm:$0xff]
      %v750 = vld [vmem:[#allocation2 + $0x60] sm:$0xff]
      %v751 = vld [vmem:[#allocation2 + $0x68] sm:$0xff]
      %v752 = vld [vmem:[#allocation2 + $0x70] sm:$0xff]
      %v753 = vld [vmem:[#allocation2 + $0x78] sm:$0xff]
      %v754 = vld [vmem:[%s3] sm:$0x1]
      %v756 = vperm.slane %v754, 0
      %v758 = vadd.f32 %v738, %v756
      %v759 = vadd.f32 %v739, %v756
      %v760 = vadd.f32 %v740, %v756
      %v761 = vadd.f32 %v741, %v756
      %v762 = vadd.f32 %v742, %v756
      %v763 = vadd.f32 %v743, %v756
      %v764 = vadd.f32 %v744, %v756
      %v765 = vadd.f32 %v745, %v756
      %v766 = vadd.f32 %v746, %v756
      %v767 = vadd.f32 %v747, %v756
      %v768 = vadd.f32 %v748, %v756
      %v769 = vadd.f32 %v749, %v756
      %v770 = vadd.f32 %v750, %v756
      %v771 = vadd.f32 %v751, %v756
      %v772 = vadd.f32 %v752, %v756
      %v773 = vadd.f32 %v753, %v756
      %v774 = vmax.f32 %v758, 0.0
      %v775 = vmax.f32 %v759, 0.0
      %v776 = vmax.f32 %v760, 0.0
      %v777 = vmax.f32 %v761, 0.0
      %v778 = vmax.f32 %v762, 0.0
      %v779 = vmax.f32 %v763, 0.0
      %v780 = vmax.f32 %v764, 0.0
      %v781 = vmax.f32 %v765, 0.0
      %v782 = vmax.f32 %v766, 0.0
      %v783 = vmax.f32 %v767, 0.0
      %v784 = vmax.f32 %v768, 0.0
      %v785 = vmax.f32 %v769, 0.0
      %v786 = vmax.f32 %v770, 0.0
      %v787 = vmax.f32 %v771, 0.0
      %v788 = vmax.f32 %v772, 0.0
      %v789 = vmax.f32 %v773, 0.0
      %v790 = vld [vmem:[#allocation3] sm:$0xff]
      %v791 = vld [vmem:[#allocation3 + $0x8] sm:$0xff]
      %v792 = vld [vmem:[#allocation3 + $0x10] sm:$0xff]
      %v793 = vld [vmem:[#allocation3 + $0x18] sm:$0xff]
      %v794 = vld [vmem:[#allocation3 + $0x20] sm:$0xff]
      %v795 = vld [vmem:[#allocation3 + $0x28] sm:$0xff]
      %v796 = vld [vmem:[#allocation3 + $0x30] sm:$0xff]
      %v797 = vld [vmem:[#allocation3 + $0x38] sm:$0xff]
      %v798 = vld [vmem:[#allocation3 + $0x40] sm:$0xff]
      %v799 = vld [vmem:[#allocation3 + $0x48] sm:$0xff]
      %v800 = vld [vmem:[#allocation3 + $0x50] sm:$0xff]
      %v801 = vld [vmem:[#allocation3 + $0x58] sm:$0xff]
      %v802 = vld [vmem:[#allocation3 + $0x60] sm:$0xff]
      %v803 = vld [vmem:[#allocation3 + $0x68] sm:$0xff]
      %v804 = vld [vmem:[#allocation3 + $0x70] sm:$0xff]
      %v805 = vld [vmem:[#allocation3 + $0x78] sm:$0xff]
      %v806 = vadd.f32 %v790, %v756
      %v807 = vadd.f32 %v791, %v756
      %v808 = vadd.f32 %v792, %v756
      %v809 = vadd.f32 %v793, %v756
      %v810 = vadd.f32 %v794, %v756
      %v811 = vadd.f32 %v795, %v756
      %v812 = vadd.f32 %v796, %v756
      %v813 = vadd.f32 %v797, %v756
      %v814 = vadd.f32 %v798, %v756
      %v815 = vadd.f32 %v799, %v756
      %v816 = vadd.f32 %v800, %v756
      %v817 = vadd.f32 %v801, %v756
      %v818 = vadd.f32 %v802, %v756
      %v819 = vadd.f32 %v803, %v756
      %v820 = vadd.f32 %v804, %v756
      %v821 = vadd.f32 %v805, %v756
      %v822 = vmax.f32 %v806, 0.0
      %v823 = vmax.f32 %v807, 0.0
      %v824 = vmax.f32 %v808, 0.0
      %v825 = vmax.f32 %v809, 0.0
      %v826 = vmax.f32 %v810, 0.0
      %v827 = vmax.f32 %v811, 0.0
      %v828 = vmax.f32 %v812, 0.0
      %v829 = vmax.f32 %v813, 0.0
      %v830 = vmax.f32 %v814, 0.0
      %v831 = vmax.f32 %v815, 0.0
      %v832 = vmax.f32 %v816, 0.0
      %v833 = vmax.f32 %v817, 0.0
      %v834 = vmax.f32 %v818, 0.0
      %v835 = vmax.f32 %v819, 0.0
      %v836 = vmax.f32 %v820, 0.0
      %v837 = vmax.f32 %v821, 0.0
      %v838 = vrot.slane %v774, 4
      %v839 = vadd.f32 %v774, %v838
      %v840 = vrot.slane %v839, 2
      %v841 = vadd.f32 %v839, %v840
      %v842 = vrot.slane %v841, 1
      %v843 = vadd.f32 %v841, %v842
      %v844 = vrot.slane %v775, 4
      %v845 = vadd.f32 %v775, %v844
      %v846 = vrot.slane %v845, 2
      %v847 = vadd.f32 %v845, %v846
      %v848 = vrot.slane %v847, 1
      %v849 = vadd.f32 %v847, %v848
      %v850 = vrot.slane %v776, 4
      %v851 = vadd.f32 %v776, %v850
      %v852 = vrot.slane %v851, 2
      %v853 = vadd.f32 %v851, %v852
      %v854 = vrot.slane %v853, 1
      %v855 = vadd.f32 %v853, %v854
      %v856 = vrot.slane %v777, 4
      %v857 = vadd.f32 %v777, %v856
      %v858 = vrot.slane %v857, 2
      %v859 = vadd.f32 %v857, %v858
      %v860 = vrot.slane %v859, 1
      %v861 = vadd.f32 %v859, %v860
      %v862 = vrot.slane %v778, 4
      %v863 = vadd.f32 %v778, %v862
      %v864 = vrot.slane %v863, 2
      %v865 = vadd.f32 %v863, %v864
      %v866 = vrot.slane %v865, 1
      %v867 = vadd.f32 %v865, %v866
      %v868 = vrot.slane %v779, 4
      %v869 = vadd.f32 %v779, %v868
      %v870 = vrot.slane %v869, 2
      %v871 = vadd.f32 %v869, %v870
      %v872 = vrot.slane %v871, 1
      %v873 = vadd.f32 %v871, %v872
      %v874 = vrot.slane %v780, 4
      %v875 = vadd.f32 %v780, %v874
      %v876 = vrot.slane %v875, 2
      %v877 = vadd.f32 %v875, %v876
      %v878 = vrot.slane %v877, 1
      %v879 = vadd.f32 %v877, %v878
      %v880 = vrot.slane %v781, 4
      %v881 = vadd.f32 %v781, %v880
      %v882 = vrot.slane %v881, 2
      %v883 = vadd.f32 %v881, %v882
      %v884 = vrot.slane %v883, 1
      %v885 = vadd.f32 %v883, %v884
      %v886 = vrot.slane %v782, 4
      %v887 = vadd.f32 %v782, %v886
      %v888 = vrot.slane %v887, 2
      %v889 = vadd.f32 %v887, %v888
      %v890 = vrot.slane %v889, 1
      %v891 = vadd.f32 %v889, %v890
      %v892 = vrot.slane %v783, 4
      %v893 = vadd.f32 %v783, %v892
      %v894 = vrot.slane %v893, 2
      %v895 = vadd.f32 %v893, %v894
      %v896 = vrot.slane %v895, 1
      %v897 = vadd.f32 %v895, %v896
      %v898 = vrot.slane %v784, 4
      %v899 = vadd.f32 %v784, %v898
      %v900 = vrot.slane %v899, 2
      %v901 = vadd.f32 %v899, %v900
      %v902 = vrot.slane %v901, 1
      %v903 = vadd.f32 %v901, %v902
      %v904 = vrot.slane %v785, 4
      %v905 = vadd.f32 %v785, %v904
      %v906 = vrot.slane %v905, 2
      %v907 = vadd.f32 %v905, %v906
      %v908 = vrot.slane %v907, 1
      %v909 = vadd.f32 %v907, %v908
      %v910 = vrot.slane %v786, 4
      %v911 = vadd.f32 %v786, %v910
      %v912 = vrot.slane %v911, 2
      %v913 = vadd.f32 %v911, %v912
      %v914 = vrot.slane %v913, 1
      %v915 = vadd.f32 %v913, %v914
      %v916 = vrot.slane %v787, 4
      %v917 = vadd.f32 %v787, %v916
      %v918 = vrot.slane %v917, 2
      %v919 = vadd.f32 %v917, %v918
      %v920 = vrot.slane %v919, 1
      %v921 = vadd.f32 %v919, %v920
      %v922 = vrot.slane %v788, 4
      %v923 = vadd.f32 %v788, %v922
      %v924 = vrot.slane %v923, 2
      %v925 = vadd.f32 %v923, %v924
      %v926 = vrot.slane %v925, 1
      %v927 = vadd.f32 %v925, %v926
      %v928 = vrot.slane %v789, 4
      %v929 = vadd.f32 %v789, %v928
      %v930 = vrot.slane %v929, 2
      %v931 = vadd.f32 %v929, %v930
      %v932 = vrot.slane %v931, 1
      %v933 = vadd.f32 %v931, %v932
      %v934 = vrot.slane %v822, 4
      %v935 = vadd.f32 %v822, %v934
      %v936 = vrot.slane %v935, 2
      %v937 = vadd.f32 %v935, %v936
      %v938 = vrot.slane %v937, 1
      %v939 = vadd.f32 %v937, %v938
      %v940 = vrot.slane %v823, 4
      %v941 = vadd.f32 %v823, %v940
      %v942 = vrot.slane %v941, 2
      %v943 = vadd.f32 %v941, %v942
      %v944 = vrot.slane %v943, 1
      %v945 = vadd.f32 %v943, %v944
      %v946 = vrot.slane %v824, 4
      %v947 = vadd.f32 %v824, %v946
      %v948 = vrot.slane %v947, 2
      %v949 = vadd.f32 %v947, %v948
      %v950 = vrot.slane %v949, 1
      %v951 = vadd.f32 %v949, %v950
      %v952 = vrot.slane %v825, 4
      %v953 = vadd.f32 %v825, %v952
      %v954 = vrot.slane %v953, 2
      %v955 = vadd.f32 %v953, %v954
      %v956 = vrot.slane %v955, 1
      %v957 = vadd.f32 %v955, %v956
      %v958 = vrot.slane %v826, 4
      %v959 = vadd.f32 %v826, %v958
      %v960 = vrot.slane %v959, 2
      %v961 = vadd.f32 %v959, %v960
      %v962 = vrot.slane %v961, 1
      %v963 = vadd.f32 %v961, %v962
      %v964 = vrot.slane %v827, 4
      %v965 = vadd.f32 %v827, %v964
      %v966 = vrot.slane %v965, 2
      %v967 = vadd.f32 %v965, %v966
      %v968 = vrot.slane %v967, 1
      %v969 = vadd.f32 %v967, %v968
      %v970 = vrot.slane %v828, 4
      %v971 = vadd.f32 %v828, %v970
      %v972 = vrot.slane %v971, 2
      %v973 = vadd.f32 %v971, %v972
      %v974 = vrot.slane %v973, 1
      %v975 = vadd.f32 %v973, %v974
      %v976 = vrot.slane %v829, 4
      %v977 = vadd.f32 %v829, %v976
      %v978 = vrot.slane %v977, 2
      %v979 = vadd.f32 %v977, %v978
      %v980 = vrot.slane %v979, 1
      %v981 = vadd.f32 %v979, %v980
      %v982 = vrot.slane %v830, 4
      %v983 = vadd.f32 %v830, %v982
      %v984 = vrot.slane %v983, 2
      %v985 = vadd.f32 %v983, %v984
      %v986 = vrot.slane %v985, 1
      %v987 = vadd.f32 %v985, %v986
      %v988 = vrot.slane %v831, 4
      %v989 = vadd.f32 %v831, %v988
      %v990 = vrot.slane %v989, 2
      %v991 = vadd.f32 %v989, %v990
      %v992 = vrot.slane %v991, 1
      %v993 = vadd.f32 %v991, %v992
      %v994 = vrot.slane %v832, 4
      %v995 = vadd.f32 %v832, %v994
      %v996 = vrot.slane %v995, 2
      %v997 = vadd.f32 %v995, %v996
      %v998 = vrot.slane %v997, 1
      %v999 = vadd.f32 %v997, %v998
      %v1000 = vrot.slane %v833, 4
      %v1001 = vadd.f32 %v833, %v1000
      %v1002 = vrot.slane %v1001, 2
      %v1003 = vadd.f32 %v1001, %v1002
      %v1004 = vrot.slane %v1003, 1
      %v1005 = vadd.f32 %v1003, %v1004
      %v1006 = vrot.slane %v834, 4
      %v1007 = vadd.f32 %v834, %v1006
      %v1008 = vrot.slane %v1007, 2
      %v1009 = vadd.f32 %v1007, %v1008
      %v1010 = vrot.slane %v1009, 1
      %v1011 = vadd.f32 %v1009, %v1010
      %v1012 = vrot.slane %v835, 4
      %v1013 = vadd.f32 %v835, %v1012
      %v1014 = vrot.slane %v1013, 2
      %v1015 = vadd.f32 %v1013, %v1014
      %v1016 = vrot.slane %v1015, 1
      %v1017 = vadd.f32 %v1015, %v1016
      %v1018 = vrot.slane %v836, 4
      %v1019 = vadd.f32 %v836, %v1018
      %v1020 = vrot.slane %v1019, 2
      %v1021 = vadd.f32 %v1019, %v1020
      %v1022 = vrot.slane %v1021, 1
      %v1023 = vadd.f32 %v1021, %v1022
      %v1024 = vrot.slane %v837, 4
      %v1025 = vadd.f32 %v837, %v1024
      %v1026 = vrot.slane %v1025, 2
      %v1027 = vadd.f32 %v1025, %v1026
      %v1028 = vrot.slane %v1027, 1
      %v1029 = vadd.f32 %v1027, %v1028
      %v1030 = vadd.f32 %v843, %v939
      %v1031 = vadd.f32 %v849, %v945
      %v1032 = vadd.f32 %v855, %v951
      %v1033 = vadd.f32 %v861, %v957
      %v1034 = vadd.f32 %v867, %v963
      %v1035 = vadd.f32 %v873, %v969
      %v1036 = vadd.f32 %v879, %v975
      %v1037 = vadd.f32 %v885, %v981
      %v1038 = vadd.f32 %v891, %v987
      %v1039 = vadd.f32 %v897, %v993
      %v1040 = vadd.f32 %v903, %v999
      %v1041 = vadd.f32 %v909, %v1005
      %v1042 = vadd.f32 %v915, %v1011
      %v1043 = vadd.f32 %v921, %v1017
      %v1044 = vadd.f32 %v927, %v1023
      %v1045 = vadd.f32 %v933, %v1029
      %v1046 = vmul.f32 %v1030, 0.0625
      %v1047 = vmul.f32 %v1031, 0.0625
      %v1048 = vmul.f32 %v1032, 0.0625
      %v1049 = vmul.f32 %v1033, 0.0625
      %v1050 = vmul.f32 %v1034, 0.0625
      %v1051 = vmul.f32 %v1035, 0.0625
      %v1052 = vmul.f32 %v1036, 0.0625
      %v1053 = vmul.f32 %v1037, 0.0625
      %v1054 = vmul.f32 %v1038, 0.0625
      %v1055 = vmul.f32 %v1039, 0.0625
      %v1056 = vmul.f32 %v1040, 0.0625
      %v1057 = vmul.f32 %v1041, 0.0625
      %v1058 = vmul.f32 %v1042, 0.0625
      %v1059 = vmul.f32 %v1043, 0.0625
      %v1060 = vmul.f32 %v1044, 0.0625
      %v1061 = vmul.f32 %v1045, 0.0625
      %v1062 = vpack.c.bf16 %v1046, %v1046
      %v1063 = vpack.c.bf16 %v1047, %v1047
      %v1064 = vpack.c.bf16 %v1048, %v1048
      %v1065 = vpack.c.bf16 %v1049, %v1049
      %v1066 = vpack.c.bf16 %v1050, %v1050
      %v1067 = vpack.c.bf16 %v1051, %v1051
      %v1068 = vpack.c.bf16 %v1052, %v1052
      %v1069 = vpack.c.bf16 %v1053, %v1053
      %v1070 = vpack.c.bf16 %v1054, %v1054
      %v1071 = vpack.c.bf16 %v1055, %v1055
      %v1072 = vpack.c.bf16 %v1056, %v1056
      %v1073 = vpack.c.bf16 %v1057, %v1057
      %v1074 = vpack.c.bf16 %v1058, %v1058
      %v1075 = vpack.c.bf16 %v1059, %v1059
      %v1076 = vpack.c.bf16 %v1060, %v1060
      %v1077 = vpack.c.bf16 %v1061, %v1061
      %v1078 = vld [vmem:[#allocation10] sm:$0xf]
      %v1079 = vld [vmem:[#allocation10 + $0x4] sm:$0xf]
      %v1080 = vld [vmem:[#allocation10 + $0x8] sm:$0xf]
      %v1081 = vld [vmem:[#allocation10 + $0xc] sm:$0xf]
      %v1082 = vld [vmem:[#allocation10 + $0x10] sm:$0xf]
      %v1083 = vld [vmem:[#allocation10 + $0x14] sm:$0xf]
      %v1084 = vld [vmem:[#allocation10 + $0x18] sm:$0xf]
      %v1085 = vld [vmem:[#allocation10 + $0x1c] sm:$0xf]
      %v1086 = vld [vmem:[#allocation10 + $0x20] sm:$0xf]
      %v1087 = vld [vmem:[#allocation10 + $0x24] sm:$0xf]
      %v1088 = vld [vmem:[#allocation10 + $0x28] sm:$0xf]
      %v1089 = vld [vmem:[#allocation10 + $0x2c] sm:$0xf]
      %v1090 = vld [vmem:[#allocation10 + $0x30] sm:$0xf]
      %v1091 = vld [vmem:[#allocation10 + $0x34] sm:$0xf]
      %v1092 = vld [vmem:[#allocation10 + $0x38] sm:$0xf]
      %v1093 = vld [vmem:[#allocation10 + $0x3c] sm:$0xf]
      %v1094 = vld [vmem:[%s5] sm:$0x1]
      %v1096 = vperm.slane %v1094, 0
      %v1114 = vunpack.c.l.b16 %v1062
      %v1115 = vunpack.c.l.b16 %v1063
      %v1116 = vunpack.c.l.b16 %v1064
      %v1117 = vunpack.c.l.b16 %v1065
      %v1118 = vunpack.c.l.b16 %v1066
      %v1119 = vunpack.c.l.b16 %v1067
      %v1120 = vunpack.c.l.b16 %v1068
      %v1121 = vunpack.c.l.b16 %v1069
      %v1122 = vunpack.c.l.b16 %v1070
      %v1123 = vunpack.c.l.b16 %v1071
      %v1124 = vunpack.c.l.b16 %v1072
      %v1125 = vunpack.c.l.b16 %v1073
      %v1126 = vunpack.c.l.b16 %v1074
      %v1127 = vunpack.c.l.b16 %v1075
      %v1128 = vunpack.c.l.b16 %v1076
      %v1129 = vunpack.c.l.b16 %v1077
      %vm1130 = vcmask 1041409
      %v1131 = vsel %vm1130, %v1115, %v1114
      %vm1132 = vcmask 1042434
      %v1133 = vsel %vm1132, %v1116, %v1131
      %vm1134 = vcmask 1043459
      %v1135 = vsel %vm1134, %v1117, %v1133
      %vm1136 = vcmask 1044484
      %v1137 = vsel %vm1136, %v1118, %v1135
      %vm1138 = vcmask 1045509
      %v1139 = vsel %vm1138, %v1119, %v1137
      %vm1140 = vcmask 1046534
      %v1141 = vsel %vm1140, %v1120, %v1139
      %vm1142 = vcmask 1047559
      %v1143 = vsel %vm1142, %v1121, %v1141
      %v1144 = vsel %vm1130, %v1123, %v1122
      %v1145 = vsel %vm1132, %v1124, %v1144
      %v1146 = vsel %vm1134, %v1125, %v1145
      %v1147 = vsel %vm1136, %v1126, %v1146
      %v1148 = vsel %vm1138, %v1127, %v1147
      %v1149 = vsel %vm1140, %v1128, %v1148
      %v1150 = vsel %vm1142, %v1129, %v1149
      %v1151 = vpack.c.b16 %v1150, %v1143
      %v1169 = vunpack.c.l.b16 %v1078
      %v1170 = vunpack.c.l.b16 %v1079
      %v1171 = vunpack.c.l.b16 %v1080
      %v1172 = vunpack.c.l.b16 %v1081
      %v1173 = vunpack.c.l.b16 %v1082
      %v1174 = vunpack.c.l.b16 %v1083
      %v1175 = vunpack.c.l.b16 %v1084
      %v1176 = vunpack.c.l.b16 %v1085
      %v1177 = vunpack.c.l.b16 %v1086
      %v1178 = vunpack.c.l.b16 %v1087
      %v1179 = vunpack.c.l.b16 %v1088
      %v1180 = vunpack.c.l.b16 %v1089
      %v1181 = vunpack.c.l.b16 %v1090
      %v1182 = vunpack.c.l.b16 %v1091
      %v1183 = vunpack.c.l.b16 %v1092
      %v1184 = vunpack.c.l.b16 %v1093
      %v1185 = vpack.c.b16 %v1170, %v1169
      %v1186 = vpack.c.b16 %v1172, %v1171
      %v1187 = vpack.c.b16 %v1174, %v1173
      %v1188 = vpack.c.b16 %v1176, %v1175
      %v1189 = vpack.c.b16 %v1178, %v1177
      %v1190 = vpack.c.b16 %v1180, %v1179
      %v1191 = vpack.c.b16 %v1182, %v1181
      %v1192 = vpack.c.b16 %v1184, %v1183
      %1201 = vmatpush.bf16.msra.mxu0 %v1192
      %1202 = vmatpush.bf16.msra.mxu0 %v1191
      %1203 = vmatpush.bf16.msra.mxu0 %v1190
      %1204 = vmatpush.bf16.msra.mxu0 %v1189
      %1205 = vmatpush.bf16.msra.mxu0 %v1188
      %1206 = vmatpush.bf16.msra.mxu0 %v1187
      %1207 = vmatpush.bf16.msra.mxu0 %v1186
      %1208 = vmatpush.bf16.msra.mxu0 %v1185
      %1209 = vmatmul.bf16.gmra.mxu0 %v1151
      %v1210 = vpop.f32.mrf.mxu0
      %v1211 = vadd.f32 %v1096, %v1210
      %v1212 = vpop.f32.mrf.mxu0
      %v1213 = vadd.f32 %v1096, %v1212
      %1214 = vdwg.mxu0
      %1215 = vst [vmem:[#allocation12] sm:$0xff] %v1211
      %1216 = vst [vmem:[#allocation12 + $0x8] sm:$0xff] %v1213
    $region49: #{tpu_custom_call.1} parent=1 // pred_fallthru
      _
    // Predicated region
    $region50: #{tpu_custom_call.1} parent=1 // pred_check
      _
    $region51: #{tpu_custom_call.1} parent=1 // pred_check_branch
      %1218 = sbr.rel (0) target = $region53
    $region52: #{tpu_custom_call.1} parent=1 // pred_region
      %1220 = vsyncadd [#allocation6], 0
      %s1221 = sshll.u32 [#allocation12], 4
      %s1222 = int_to_ptr.vmem [resolvable:$true] %s1221
      %s1223 = sshll.u32 %s6, 4
      %s1224 = int_to_ptr.hbm [resolvable:$true] %s1223
      %1229 = dma.vmem_to_hbm [thread:$0]  %s1222, 256, %s1224, [#allocation6], 128, 128, 8
    $region53: #{tpu_custom_call.1} parent=1 // pred_fallthru
      _
    // Predicated region
    $region54: #{tpu_custom_call.1} parent=1 // pred_check
      _
    $region55: #{tpu_custom_call.1} parent=1 // pred_check_branch
      %1231 = sbr.rel (0) target = $region57
    $region56: #{tpu_custom_call.1} parent=1 // pred_region
      %1233 = dma.done [#allocation6], 256
    $region57: #{tpu_custom_call.1} parent=1 // pred_fallthru
      _
    %1234 = vsyncpa [#allocation5], 1
    %1235 = vsyncpa [#allocation8], 1
    %1236 = vsyncpa [#allocation11], 1
    %1237 = vsyncpa [#allocation6], 1

// kernel: tpu_custom_call.1
$region0: #{tpu_custom_call.1}
  #allocation0 [shape = 'u32[]', space=smem, size = 0x4, offset = 0x4, fixed_abs, tag = 'smem constant byte address 0x4 - core index']
  #allocation1 [shape = 'u32[72,128]{1,0:T(1,128)}', space=vmem, size = 0x9000, scoped, tag = 'internal scratch']
  #allocation2 [shape = 'f32[128,128]{1,0:T(8,128)}', space=vmem, size = 0x10000, scoped, tag = 'scratch operand']
  #allocation3 [shape = 'f32[128,128]{1,0:T(8,128)}', space=vmem, size = 0x10000, scoped, tag = 'scratch operand']
  %s0 = inlined_call_operand.hbm [shape: bf16[128,256], index: 0, kind: input, shape index: {}]
  %s1 = inlined_call_operand.hbm [shape: bf16[128,256], index: 1, kind: input, shape index: {}]
  %s2 = inlined_call_operand.hbm [shape: bf16[256,128], index: 2, kind: input, shape index: {}]
  %s3 = inlined_call_operand.vmem [shape: f32[1,128], index: 3, kind: input, shape index: {}]
  %s4 = inlined_call_operand.hbm [shape: bf16[128,128], index: 4, kind: input, shape index: {}]
  %s5 = inlined_call_operand.vmem [shape: f32[1,128], index: 5, kind: input, shape index: {}]
  %s6 = inlined_call_operand.hbm [shape: f32[16,128], index: 6, kind: output, shape index: {}]
  %s7 = sld [smem:[#allocation0]]
  $region58: #{tpu_custom_call.1} parent=0
    _
  %s9 = ssub.s32 1, %s7
  %s10 = scalar_select 0, %s9, %s7
  $region1: #{tpu_custom_call.1} parent=0
    #allocation4 [shape = 'u8[65536]{0}', space=vmem, size = 0x10000, scoped, tag = 'input window, operand 0, single buffered']
    #allocation5 [shape = 's32[1]{0}', space=sflag, size = 0x4, scoped, tag = 'scoped memory for tpu_custom_call.1']
    #allocation6 [shape = 's32[1]{0}', space=sflag, size = 0x4, scoped, tag = 'scoped memory for tpu_custom_call.1']
    #allocation7 [shape = 'u8[65536]{0}', space=vmem, size = 0x10000, scoped, tag = 'input window, operand 1, single buffered']
    #allocation8 [shape = 's32[1]{0}', space=sflag, size = 0x4, scoped, tag = 'scoped memory for tpu_custom_call.1']
    #allocation9 [shape = 'u8[65536]{0}', space=vmem, size = 0x10000, scoped, tag = 'input window, operand 2, single buffered']
    #allocation10 [shape = 'u8[32768]{0}', space=vmem, size = 0x8000, scoped, tag = 'input window, operand 4, single buffered']
    #allocation11 [shape = 's32[1]{0}', space=sflag, size = 0x4, scoped, tag = 'scoped memory for tpu_custom_call.1']
    #allocation12 [shape = 'u8[8192]{0}', space=vmem, size = 0x2000, scoped, tag = 'output window, operand 0, single buffered']
    %11 = vsyncpa [#allocation5], 0
    %12 = vsyncpa [#allocation8], 0
    %13 = vsyncpa [#allocation11], 0
    %14 = vsyncpa [#allocation6], 0
    // Predicated region
    $region2: #{tpu_custom_call.1} parent=1 // pred_check
      _
    $region3: #{tpu_custom_call.1} parent=1 // pred_check_branch
      %16 = sbr.rel (0) target = $region5
    $region4: #{tpu_custom_call.1} parent=1 // pred_region
      %18 = vsyncadd [#allocation5], 0
      %s19 = sshll.u32 %s0, 4
      %s20 = int_to_ptr.hbm [resolvable:$true] %s19
      %s21 = sshll.u32 [#allocation4], 4
      %s22 = int_to_ptr.vmem [resolvable:$true] %s21
      %27 = dma.hbm_to_vmem [thread:$0]  %s20, 2048, %s22, [#allocation5], 128, 128, 8
    $region5: #{tpu_custom_call.1} parent=1 // pred_fallthru
      _
    // Predicated region
    $region6: #{tpu_custom_call.1} parent=1 // pred_check
      _
    $region7: #{tpu_custom_call.1} parent=1 // pred_check_branch
      %29 = sbr.rel (0) target = $region9
    $region8: #{tpu_custom_call.1} parent=1 // pred_region
      %31 = vsyncadd [#allocation8], 0
      %s32 = sshll.u32 %s1, 4
      %s33 = int_to_ptr.hbm [resolvable:$true] %s32
      %s34 = sshll.u32 [#allocation7], 4
      %s35 = int_to_ptr.vmem [resolvable:$true] %s34
      %40 = dma.hbm_to_vmem [thread:$0]  %s33, 2048, %s35, [#allocation8], 128, 128, 8
    $region9: #{tpu_custom_call.1} parent=1 // pred_fallthru
      _
    // Predicated region
    $region10: #{tpu_custom_call.1} parent=1 // pred_check
      _
    $region11: #{tpu_custom_call.1} parent=1 // pred_check_branch
      %42 = sbr.rel (0) target = $region13
    $region12: #{tpu_custom_call.1} parent=1 // pred_region
      %44 = vsyncadd [#allocation8], 0
      %s45 = sshll.u32 %s2, 4
      %s46 = int_to_ptr.hbm [resolvable:$true] %s45
      %s47 = sshll.u32 [#allocation9], 4
      %s48 = int_to_ptr.vmem [resolvable:$true] %s47
      %53 = dma.hbm_to_vmem [thread:$0]  %s46, 2048, %s48, [#allocation8], 64, 64, 4
    $region13: #{tpu_custom_call.1} parent=1 // pred_fallthru
      _
    // Predicated region
    $region14: #{tpu_custom_call.1} parent=1 // pred_check
      _
    $region15: #{tpu_custom_call.1} parent=1 // pred_check_branch
      %55 = sbr.rel (0) target = $region17
    $region16: #{tpu_custom_call.1} parent=1 // pred_region
      _
    $region17: #{tpu_custom_call.1} parent=1 // pred_fallthru
      _
    // Predicated region
    $region18: #{tpu_custom_call.1} parent=1 // pred_check
      _
    $region19: #{tpu_custom_call.1} parent=1 // pred_check_branch
      %57 = sbr.rel (0) target = $region21
    $region20: #{tpu_custom_call.1} parent=1 // pred_region
      %59 = vsyncadd [#allocation11], 0
      %s60 = sshll.u32 %s4, 4
      %s61 = int_to_ptr.hbm [resolvable:$true] %s60
      %s62 = sshll.u32 [#allocation10], 4
      %s63 = int_to_ptr.vmem [resolvable:$true] %s62
      %68 = dma.hbm_to_vmem [thread:$0]  %s61, 1024, %s63, [#allocation11], 64, 64, 4
    $region21: #{tpu_custom_call.1} parent=1 // pred_fallthru
      _
    // Predicated region
    $region22: #{tpu_custom_call.1} parent=1 // pred_check
      _
    $region23: #{tpu_custom_call.1} parent=1 // pred_check_branch
      %70 = sbr.rel (0) target = $region25
    $region24: #{tpu_custom_call.1} parent=1 // pred_region
      _
    $region25: #{tpu_custom_call.1} parent=1 // pred_fallthru
      _
    // Predicated region
    $region26: #{tpu_custom_call.1} parent=1 // pred_check
      _
    $region27: #{tpu_custom_call.1} parent=1 // pred_check_branch
      %72 = sbr.rel (0) target = $region29
    $region28: #{tpu_custom_call.1} parent=1 // pred_region
      %74 = dma.done [#allocation5], 2048
    $region29: #{tpu_custom_call.1} parent=1 // pred_fallthru
      _
    // Predicated region
    $region30: #{tpu_custom_call.1} parent=1 // pred_check
      _
    $region31: #{tpu_custom_call.1} parent=1 // pred_check_branch
      %76 = sbr.rel (0) target = $region33
    $region32: #{tpu_custom_call.1} parent=1 // pred_region
      %78 = dma.done [#allocation8], 2048
    $region33: #{tpu_custom_call.1} parent=1 // pred_fallthru
      _
    // Predicated region
    $region34: #{tpu_custom_call.1} parent=1 // pred_check
      _
    $region35: #{tpu_custom_call.1} parent=1 // pred_check_branch
      %80 = sbr.rel (0) target = $region37
    $region36: #{tpu_custom_call.1} parent=1 // pred_region
      %82 = dma.done [#allocation8], 2048
    $region37: #{tpu_custom_call.1} parent=1 // pred_fallthru
      _
    // Predicated region
    $region38: #{tpu_custom_call.1} parent=1 // pred_check
      _
    $region39: #{tpu_custom_call.1} parent=1 // pred_check_branch
      %84 = sbr.rel (0) target = $region41
    $region40: #{tpu_custom_call.1} parent=1 // pred_region
      %86 = dma.done [#allocation11], 1024
    $region41: #{tpu_custom_call.1} parent=1 // pred_fallthru
      _
    %p87 = scmp.eq.s32.totalorder 0, 0
    // Predicated region
    $region42: #{tpu_custom_call.1} parent=1 // pred_check
      %p88 = pneg %p87
    $region43: #{tpu_custom_call.1} parent=1 // pred_check_branch
      %90 = sbr.rel (%p88) target = $region45
    $region44: #{tpu_custom_call.1} parent=1 // pred_region
      %91 = vst [vmem:[#allocation2] sm:$0xff] 0.0
      %92 = vst [vmem:[#allocation2 + $0x8] sm:$0xff] 0.0
      %93 = vst [vmem:[#allocation2 + $0x10] sm:$0xff] 0.0
      %94 = vst [vmem:[#allocation2 + $0x18] sm:$0xff] 0.0
      %95 = vst [vmem:[#allocation2 + $0x20] sm:$0xff] 0.0
      %96 = vst [vmem:[#allocation2 + $0x28] sm:$0xff] 0.0
      %97 = vst [vmem:[#allocation2 + $0x30] sm:$0xff] 0.0
      %98 = vst [vmem:[#allocation2 + $0x38] sm:$0xff] 0.0
      %99 = vst [vmem:[#allocation2 + $0x40] sm:$0xff] 0.0
      %100 = vst [vmem:[#allocation2 + $0x48] sm:$0xff] 0.0
      %101 = vst [vmem:[#allocation2 + $0x50] sm:$0xff] 0.0
      %102 = vst [vmem:[#allocation2 + $0x58] sm:$0xff] 0.0
      %103 = vst [vmem:[#allocation2 + $0x60] sm:$0xff] 0.0
      %104 = vst [vmem:[#allocation2 + $0x68] sm:$0xff] 0.0
      %105 = vst [vmem:[#allocation2 + $0x70] sm:$0xff] 0.0
      %106 = vst [vmem:[#allocation2 + $0x78] sm:$0xff] 0.0
      %107 = vst [vmem:[#allocation3] sm:$0xff] 0.0
      %108 = vst [vmem:[#allocation3 + $0x8] sm:$0xff] 0.0
      %109 = vst [vmem:[#allocation3 + $0x10] sm:$0xff] 0.0
      %110 = vst [vmem:[#allocation3 + $0x18] sm:$0xff] 0.0
      %111 = vst [vmem:[#allocation3 + $0x20] sm:$0xff] 0.0
      %112 = vst [vmem:[#allocation3 + $0x28] sm:$0xff] 0.0
      %113 = vst [vmem:[#allocation3 + $0x30] sm:$0xff] 0.0
      %114 = vst [vmem:[#allocation3 + $0x38] sm:$0xff] 0.0
      %115 = vst [vmem:[#allocation3 + $0x40] sm:$0xff] 0.0
      %116 = vst [vmem:[#allocation3 + $0x48] sm:$0xff] 0.0
      %117 = vst [vmem:[#allocation3 + $0x50] sm:$0xff] 0.0
      %118 = vst [vmem:[#allocation3 + $0x58] sm:$0xff] 0.0
      %119 = vst [vmem:[#allocation3 + $0x60] sm:$0xff] 0.0
      %120 = vst [vmem:[#allocation3 + $0x68] sm:$0xff] 0.0
      %121 = vst [vmem:[#allocation3 + $0x70] sm:$0xff] 0.0
      %122 = vst [vmem:[#allocation3 + $0x78] sm:$0xff] 0.0
    $region45: #{tpu_custom_call.1} parent=1 // pred_fallthru
      _
    %v123 = vld [vmem:[#allocation9] sm:$0xf]
    %v124 = vld [vmem:[#allocation9 + $0x4] sm:$0xf]
    %v125 = vld [vmem:[#allocation9 + $0x8] sm:$0xf]
    %v126 = vld [vmem:[#allocation9 + $0xc] sm:$0xf]
    %v127 = vld [vmem:[#allocation9 + $0x10] sm:$0xf]
    %v128 = vld [vmem:[#allocation9 + $0x14] sm:$0xf]
    %v129 = vld [vmem:[#allocation9 + $0x18] sm:$0xf]
    %v130 = vld [vmem:[#allocation9 + $0x1c] sm:$0xf]
    %v131 = vld [vmem:[#allocation9 + $0x20] sm:$0xf]
    %v132 = vld [vmem:[#allocation9 + $0x24] sm:$0xf]
    %v133 = vld [vmem:[#allocation9 + $0x28] sm:$0xf]
    %v134 = vld [vmem:[#allocation9 + $0x2c] sm:$0xf]
    %v135 = vld [vmem:[#allocation9 + $0x30] sm:$0xf]
    %v136 = vld [vmem:[#allocation9 + $0x34] sm:$0xf]
    %v137 = vld [vmem:[#allocation9 + $0x38] sm:$0xf]
    %v138 = vld [vmem:[#allocation9 + $0x3c] sm:$0xf]
    %v139 = vld [vmem:[#allocation9 + $0x40] sm:$0xf]
    %v140 = vld [vmem:[#allocation9 + $0x44] sm:$0xf]
    %v141 = vld [vmem:[#allocation9 + $0x48] sm:$0xf]
    %v142 = vld [vmem:[#allocation9 + $0x4c] sm:$0xf]
    %v143 = vld [vmem:[#allocation9 + $0x50] sm:$0xf]
    %v144 = vld [vmem:[#allocation9 + $0x54] sm:$0xf]
    %v145 = vld [vmem:[#allocation9 + $0x58] sm:$0xf]
    %v146 = vld [vmem:[#allocation9 + $0x5c] sm:$0xf]
    %v147 = vld [vmem:[#allocation9 + $0x60] sm:$0xf]
    %v148 = vld [vmem:[#allocation9 + $0x64] sm:$0xf]
    %v149 = vld [vmem:[#allocation9 + $0x68] sm:$0xf]
    %v150 = vld [vmem:[#allocation9 + $0x6c] sm:$0xf]
    %v151 = vld [vmem:[#allocation9 + $0x70] sm:$0xf]
    %v152 = vld [vmem:[#allocation9 + $0x74] sm:$0xf]
    %v153 = vld [vmem:[#allocation9 + $0x78] sm:$0xf]
    %v154 = vld [vmem:[#allocation9 + $0x7c] sm:$0xf]
    %v155 = vld [vmem:[#allocation2] sm:$0xff]
    %v156 = vld [vmem:[#allocation2 + $0x8] sm:$0xff]
    %v157 = vld [vmem:[#allocation2 + $0x10] sm:$0xff]
    %v158 = vld [vmem:[#allocation2 + $0x18] sm:$0xff]
    %v159 = vld [vmem:[#allocation2 + $0x20] sm:$0xff]
    %v160 = vld [vmem:[#allocation2 + $0x28] sm:$0xff]
    %v161 = vld [vmem:[#allocation2 + $0x30] sm:$0xff]
    %v162 = vld [vmem:[#allocation2 + $0x38] sm:$0xff]
    %v163 = vld [vmem:[#allocation2 + $0x40] sm:$0xff]
    %v164 = vld [vmem:[#allocation2 + $0x48] sm:$0xff]
    %v165 = vld [vmem:[#allocation2 + $0x50] sm:$0xff]
    %v166 = vld [vmem:[#allocation2 + $0x58] sm:$0xff]
    %v167 = vld [vmem:[#allocation2 + $0x60] sm:$0xff]
    %v168 = vld [vmem:[#allocation2 + $0x68] sm:$0xff]
    %v169 = vld [vmem:[#allocation2 + $0x70] sm:$0xff]
    %v170 = vld [vmem:[#allocation2 + $0x78] sm:$0xff]
    %v171 = vld [vmem:[#allocation4] sm:$0xff]
    %v172 = vld [vmem:[#allocation4 + $0x8] sm:$0xff]
    %v173 = vld [vmem:[#allocation4 + $0x10] sm:$0xff]
    %v174 = vld [vmem:[#allocation4 + $0x18] sm:$0xff]
    %v175 = vld [vmem:[#allocation4 + $0x20] sm:$0xff]
    %v176 = vld [vmem:[#allocation4 + $0x28] sm:$0xff]
    %v177 = vld [vmem:[#allocation4 + $0x30] sm:$0xff]
    %v178 = vld [vmem:[#allocation4 + $0x38] sm:$0xff]
    %v179 = vld [vmem:[#allocation4 + $0x40] sm:$0xff]
    %v180 = vld [vmem:[#allocation4 + $0x48] sm:$0xff]
    %v181 = vld [vmem:[#allocation4 + $0x50] sm:$0xff]
    %v182 = vld [vmem:[#allocation4 + $0x58] sm:$0xff]
    %v183 = vld [vmem:[#allocation4 + $0x60] sm:$0xff]
    %v184 = vld [vmem:[#allocation4 + $0x68] sm:$0xff]
    %v185 = vld [vmem:[#allocation4 + $0x70] sm:$0xff]
    %v186 = vld [vmem:[#allocation4 + $0x78] sm:$0xff]
    %v203 = vunpack.c.l.b16 %v171
    %v204 = vunpack.c.h.b16 %v171
    %v205 = vunpack.c.l.b16 %v172
    %v206 = vunpack.c.h.b16 %v172
    %v207 = vunpack.c.l.b16 %v173
    %v208 = vunpack.c.h.b16 %v173
    %v209 = vunpack.c.l.b16 %v174
    %v210 = vunpack.c.h.b16 %v174
    %v211 = vunpack.c.l.b16 %v175
    %v212 = vunpack.c.h.b16 %v175
    %v213 = vunpack.c.l.b16 %v176
    %v214 = vunpack.c.h.b16 %v176
    %v215 = vunpack.c.l.b16 %v177
    %v216 = vunpack.c.h.b16 %v177
    %v217 = vunpack.c.l.b16 %v178
    %v218 = vunpack.c.h.b16 %v178
    %v219 = vunpack.c.l.b16 %v179
    %v220 = vunpack.c.h.b16 %v179
    %v221 = vunpack.c.l.b16 %v180
    %v222 = vunpack.c.h.b16 %v180
    %v223 = vunpack.c.l.b16 %v181
    %v224 = vunpack.c.h.b16 %v181
    %v225 = vunpack.c.l.b16 %v182
    %v226 = vunpack.c.h.b16 %v182
    %v227 = vunpack.c.l.b16 %v183
    %v228 = vunpack.c.h.b16 %v183
    %v229 = vunpack.c.l.b16 %v184
    %v230 = vunpack.c.h.b16 %v184
    %v231 = vunpack.c.l.b16 %v185
    %v232 = vunpack.c.h.b16 %v185
    %v233 = vunpack.c.l.b16 %v186
    %v234 = vunpack.c.h.b16 %v186
    %v235 = vpack.c.b16 %v205, %v203
    %v236 = vpack.c.b16 %v206, %v204
    %v237 = vpack.c.b16 %v209, %v207
    %v238 = vpack.c.b16 %v210, %v208
    %v239 = vpack.c.b16 %v213, %v211
    %v240 = vpack.c.b16 %v214, %v212
    %v241 = vpack.c.b16 %v217, %v215
    %v242 = vpack.c.b16 %v218, %v216
    %v243 = vpack.c.b16 %v221, %v219
    %v244 = vpack.c.b16 %v222, %v220
    %v245 = vpack.c.b16 %v225, %v223
    %v246 = vpack.c.b16 %v226, %v224
    %v247 = vpack.c.b16 %v229, %v227
    %v248 = vpack.c.b16 %v230, %v228
    %v249 = vpack.c.b16 %v233, %v231
    %v250 = vpack.c.b16 %v234, %v232
    %v299 = vunpack.c.l.b16 %v123
    %v300 = vunpack.c.l.b16 %v124
    %v301 = vunpack.c.l.b16 %v125
    %v302 = vunpack.c.l.b16 %v126
    %v303 = vunpack.c.l.b16 %v127
    %v304 = vunpack.c.l.b16 %v128
    %v305 = vunpack.c.l.b16 %v129
    %v306 = vunpack.c.l.b16 %v130
    %v307 = vunpack.c.l.b16 %v131
    %v308 = vunpack.c.l.b16 %v132
    %v309 = vunpack.c.l.b16 %v133
    %v310 = vunpack.c.l.b16 %v134
    %v311 = vunpack.c.l.b16 %v135
    %v312 = vunpack.c.l.b16 %v136
    %v313 = vunpack.c.l.b16 %v137
    %v314 = vunpack.c.l.b16 %v138
    %v315 = vunpack.c.l.b16 %v139
    %v316 = vunpack.c.l.b16 %v140
    %v317 = vunpack.c.l.b16 %v141
    %v318 = vunpack.c.l.b16 %v142
    %v319 = vunpack.c.l.b16 %v143
    %v320 = vunpack.c.l.b16 %v144
    %v321 = vunpack.c.l.b16 %v145
    %v322 = vunpack.c.l.b16 %v146
    %v323 = vunpack.c.l.b16 %v147
    %v324 = vunpack.c.l.b16 %v148
    %v325 = vunpack.c.l.b16 %v149
    %v326 = vunpack.c.l.b16 %v150
    %v327 = vunpack.c.l.b16 %v151
    %v328 = vunpack.c.l.b16 %v152
    %v329 = vunpack.c.l.b16 %v153
    %v330 = vunpack.c.l.b16 %v154
    %v331 = vpack.c.b16 %v300, %v299
    %v332 = vpack.c.b16 %v302, %v301
    %v333 = vpack.c.b16 %v304, %v303
    %v334 = vpack.c.b16 %v306, %v305
    %v335 = vpack.c.b16 %v308, %v307
    %v336 = vpack.c.b16 %v310, %v309
    %v337 = vpack.c.b16 %v312, %v311
    %v338 = vpack.c.b16 %v314, %v313
    %v339 = vpack.c.b16 %v316, %v315
    %v340 = vpack.c.b16 %v318, %v317
    %v341 = vpack.c.b16 %v320, %v319
    %v342 = vpack.c.b16 %v322, %v321
    %v343 = vpack.c.b16 %v324, %v323
    %v344 = vpack.c.b16 %v326, %v325
    %v345 = vpack.c.b16 %v328, %v327
    %v346 = vpack.c.b16 %v330, %v329
    %363 = vmatpush.bf16.msra.mxu0 %v338
    %364 = vmatpush.bf16.msra.mxu0 %v337
    %365 = vmatpush.bf16.msra.mxu0 %v336
    %366 = vmatpush.bf16.msra.mxu0 %v335
    %367 = vmatpush.bf16.msra.mxu0 %v334
    %368 = vmatpush.bf16.msra.mxu0 %v333
    %369 = vmatpush.bf16.msra.mxu0 %v332
    %370 = vmatpush.bf16.msra.mxu0 %v331
    %371 = vmatmul.bf16.gmra.mxu0 %v235
    %v372 = vpop.f32.mrf.mxu0
    %v373 = vadd.f32 0.0, %v372
    %v374 = vpop.f32.mrf.mxu0
    %v375 = vadd.f32 0.0, %v374
    %376 = vmatmul.bf16.gmra.mxu0 %v237
    %v377 = vpop.f32.mrf.mxu0
    %v378 = vadd.f32 0.0, %v377
    %v379 = vpop.f32.mrf.mxu0
    %v380 = vadd.f32 0.0, %v379
    %381 = vmatmul.bf16.gmra.mxu0 %v239
    %v382 = vpop.f32.mrf.mxu0
    %v383 = vadd.f32 0.0, %v382
    %v384 = vpop.f32.mrf.mxu0
    %v385 = vadd.f32 0.0, %v384
    %386 = vmatmul.bf16.gmra.mxu0 %v241
    %v387 = vpop.f32.mrf.mxu0
    %v388 = vadd.f32 0.0, %v387
    %v389 = vpop.f32.mrf.mxu0
    %v390 = vadd.f32 0.0, %v389
    %391 = vmatmul.bf16.gmra.mxu0 %v243
    %v392 = vpop.f32.mrf.mxu0
    %v393 = vadd.f32 0.0, %v392
    %v394 = vpop.f32.mrf.mxu0
    %v395 = vadd.f32 0.0, %v394
    %396 = vmatmul.bf16.gmra.mxu0 %v245
    %v397 = vpop.f32.mrf.mxu0
    %v398 = vadd.f32 0.0, %v397
    %v399 = vpop.f32.mrf.mxu0
    %v400 = vadd.f32 0.0, %v399
    %401 = vmatmul.bf16.gmra.mxu0 %v247
    %v402 = vpop.f32.mrf.mxu0
    %v403 = vadd.f32 0.0, %v402
    %v404 = vpop.f32.mrf.mxu0
    %v405 = vadd.f32 0.0, %v404
    %406 = vmatmul.bf16.gmra.mxu0 %v249
    %v407 = vpop.f32.mrf.mxu0
    %v408 = vadd.f32 0.0, %v407
    %v409 = vpop.f32.mrf.mxu0
    %v410 = vadd.f32 0.0, %v409
    %411 = vdwg.mxu0
    %412 = vmatpush.bf16.msra.mxu0 %v346
    %413 = vmatpush.bf16.msra.mxu0 %v345
    %414 = vmatpush.bf16.msra.mxu0 %v344
    %415 = vmatpush.bf16.msra.mxu0 %v343
    %416 = vmatpush.bf16.msra.mxu0 %v342
    %417 = vmatpush.bf16.msra.mxu0 %v341
    %418 = vmatpush.bf16.msra.mxu0 %v340
    %419 = vmatpush.bf16.msra.mxu0 %v339
    %420 = vmatmul.bf16.gmra.mxu0 %v236
    %v421 = vpop.f32.mrf.mxu0
    %v422 = vadd.f32 %v373, %v421
    %v423 = vpop.f32.mrf.mxu0
    %v424 = vadd.f32 %v375, %v423
    %425 = vmatmul.bf16.gmra.mxu0 %v238
    %v426 = vpop.f32.mrf.mxu0
    %v427 = vadd.f32 %v378, %v426
    %v428 = vpop.f32.mrf.mxu0
    %v429 = vadd.f32 %v380, %v428
    %430 = vmatmul.bf16.gmra.mxu0 %v240
    %v431 = vpop.f32.mrf.mxu0
    %v432 = vadd.f32 %v383, %v431
    %v433 = vpop.f32.mrf.mxu0
    %v434 = vadd.f32 %v385, %v433
    %435 = vmatmul.bf16.gmra.mxu0 %v242
    %v436 = vpop.f32.mrf.mxu0
    %v437 = vadd.f32 %v388, %v436
    %v438 = vpop.f32.mrf.mxu0
    %v439 = vadd.f32 %v390, %v438
    %440 = vmatmul.bf16.gmra.mxu0 %v244
    %v441 = vpop.f32.mrf.mxu0
    %v442 = vadd.f32 %v393, %v441
    %v443 = vpop.f32.mrf.mxu0
    %v444 = vadd.f32 %v395, %v443
    %445 = vmatmul.bf16.gmra.mxu0 %v246
    %v446 = vpop.f32.mrf.mxu0
    %v447 = vadd.f32 %v398, %v446
    %v448 = vpop.f32.mrf.mxu0
    %v449 = vadd.f32 %v400, %v448
    %450 = vmatmul.bf16.gmra.mxu0 %v248
    %v451 = vpop.f32.mrf.mxu0
    %v452 = vadd.f32 %v403, %v451
    %v453 = vpop.f32.mrf.mxu0
    %v454 = vadd.f32 %v405, %v453
    %455 = vmatmul.bf16.gmra.mxu0 %v250
    %v456 = vpop.f32.mrf.mxu0
    %v457 = vadd.f32 %v408, %v456
    %v458 = vpop.f32.mrf.mxu0
    %v459 = vadd.f32 %v410, %v458
    %460 = vdwg.mxu0
    %v461 = vadd.f32 %v155, %v422
    %v462 = vadd.f32 %v156, %v424
    %v463 = vadd.f32 %v157, %v427
    %v464 = vadd.f32 %v158, %v429
    %v465 = vadd.f32 %v159, %v432
    %v466 = vadd.f32 %v160, %v434
    %v467 = vadd.f32 %v161, %v437
    %v468 = vadd.f32 %v162, %v439
    %v469 = vadd.f32 %v163, %v442
    %v470 = vadd.f32 %v164, %v444
    %v471 = vadd.f32 %v165, %v447
    %v472 = vadd.f32 %v166, %v449
    %v473 = vadd.f32 %v167, %v452
    %v474 = vadd.f32 %v168, %v454
    %v475 = vadd.f32 %v169, %v457
    %v476 = vadd.f32 %v170, %v459
    %477 = vst [vmem:[#allocation2] sm:$0xff] %v461
    %478 = vst [vmem:[#allocation2 + $0x8] sm:$0xff] %v462
    %479 = vst [vmem:[#allocation2 + $0x10] sm:$0xff] %v463
    %480 = vst [vmem:[#allocation2 + $0x18] sm:$0xff] %v464
    %481 = vst [vmem:[#allocation2 + $0x20] sm:$0xff] %v465
    %482 = vst [vmem:[#allocation2 + $0x28] sm:$0xff] %v466
    %483 = vst [vmem:[#allocation2 + $0x30] sm:$0xff] %v467
    %484 = vst [vmem:[#allocation2 + $0x38] sm:$0xff] %v468
    %485 = vst [vmem:[#allocation2 + $0x40] sm:$0xff] %v469
    %486 = vst [vmem:[#allocation2 + $0x48] sm:$0xff] %v470
    %487 = vst [vmem:[#allocation2 + $0x50] sm:$0xff] %v471
    %488 = vst [vmem:[#allocation2 + $0x58] sm:$0xff] %v472
    %489 = vst [vmem:[#allocation2 + $0x60] sm:$0xff] %v473
    %490 = vst [vmem:[#allocation2 + $0x68] sm:$0xff] %v474
    %491 = vst [vmem:[#allocation2 + $0x70] sm:$0xff] %v475
    %492 = vst [vmem:[#allocation2 + $0x78] sm:$0xff] %v476
    %v493 = vld [vmem:[#allocation3] sm:$0xff]
    %v494 = vld [vmem:[#allocation3 + $0x8] sm:$0xff]
    %v495 = vld [vmem:[#allocation3 + $0x10] sm:$0xff]
    %v496 = vld [vmem:[#allocation3 + $0x18] sm:$0xff]
    %v497 = vld [vmem:[#allocation3 + $0x20] sm:$0xff]
    %v498 = vld [vmem:[#allocation3 + $0x28] sm:$0xff]
    %v499 = vld [vmem:[#allocation3 + $0x30] sm:$0xff]
    %v500 = vld [vmem:[#allocation3 + $0x38] sm:$0xff]
    %v501 = vld [vmem:[#allocation3 + $0x40] sm:$0xff]
    %v502 = vld [vmem:[#allocation3 + $0x48] sm:$0xff]
    %v503 = vld [vmem:[#allocation3 + $0x50] sm:$0xff]
    %v504 = vld [vmem:[#allocation3 + $0x58] sm:$0xff]
    %v505 = vld [vmem:[#allocation3 + $0x60] sm:$0xff]
    %v506 = vld [vmem:[#allocation3 + $0x68] sm:$0xff]
    %v507 = vld [vmem:[#allocation3 + $0x70] sm:$0xff]
    %v508 = vld [vmem:[#allocation3 + $0x78] sm:$0xff]
    %v509 = vld [vmem:[#allocation7] sm:$0xff]
    %v510 = vld [vmem:[#allocation7 + $0x8] sm:$0xff]
    %v511 = vld [vmem:[#allocation7 + $0x10] sm:$0xff]
    %v512 = vld [vmem:[#allocation7 + $0x18] sm:$0xff]
    %v513 = vld [vmem:[#allocation7 + $0x20] sm:$0xff]
    %v514 = vld [vmem:[#allocation7 + $0x28] sm:$0xff]
    %v515 = vld [vmem:[#allocation7 + $0x30] sm:$0xff]
    %v516 = vld [vmem:[#allocation7 + $0x38] sm:$0xff]
    %v517 = vld [vmem:[#allocation7 + $0x40] sm:$0xff]
    %v518 = vld [vmem:[#allocation7 + $0x48] sm:$0xff]
    %v519 = vld [vmem:[#allocation7 + $0x50] sm:$0xff]
    %v520 = vld [vmem:[#allocation7 + $0x58] sm:$0xff]
    %v521 = vld [vmem:[#allocation7 + $0x60] sm:$0xff]
    %v522 = vld [vmem:[#allocation7 + $0x68] sm:$0xff]
    %v523 = vld [vmem:[#allocation7 + $0x70] sm:$0xff]
    %v524 = vld [vmem:[#allocation7 + $0x78] sm:$0xff]
    %v541 = vunpack.c.l.b16 %v509
    %v542 = vunpack.c.h.b16 %v509
    %v543 = vunpack.c.l.b16 %v510
    %v544 = vunpack.c.h.b16 %v510
    %v545 = vunpack.c.l.b16 %v511
    %v546 = vunpack.c.h.b16 %v511
    %v547 = vunpack.c.l.b16 %v512
    %v548 = vunpack.c.h.b16 %v512
    %v549 = vunpack.c.l.b16 %v513
    %v550 = vunpack.c.h.b16 %v513
    %v551 = vunpack.c.l.b16 %v514
    %v552 = vunpack.c.h.b16 %v514
    %v553 = vunpack.c.l.b16 %v515
    %v554 = vunpack.c.h.b16 %v515
    %v555 = vunpack.c.l.b16 %v516
    %v556 = vunpack.c.h.b16 %v516
    %v557 = vunpack.c.l.b16 %v517
    %v558 = vunpack.c.h.b16 %v517
    %v559 = vunpack.c.l.b16 %v518
    %v560 = vunpack.c.h.b16 %v518
    %v561 = vunpack.c.l.b16 %v519
    %v562 = vunpack.c.h.b16 %v519
    %v563 = vunpack.c.l.b16 %v520
    %v564 = vunpack.c.h.b16 %v520
    %v565 = vunpack.c.l.b16 %v521
    %v566 = vunpack.c.h.b16 %v521
    %v567 = vunpack.c.l.b16 %v522
    %v568 = vunpack.c.h.b16 %v522
    %v569 = vunpack.c.l.b16 %v523
    %v570 = vunpack.c.h.b16 %v523
    %v571 = vunpack.c.l.b16 %v524
    %v572 = vunpack.c.h.b16 %v524
    %v573 = vpack.c.b16 %v543, %v541
    %v574 = vpack.c.b16 %v544, %v542
    %v575 = vpack.c.b16 %v547, %v545
    %v576 = vpack.c.b16 %v548, %v546
    %v577 = vpack.c.b16 %v551, %v549
    %v578 = vpack.c.b16 %v552, %v550
    %v579 = vpack.c.b16 %v555, %v553
    %v580 = vpack.c.b16 %v556, %v554
    %v581 = vpack.c.b16 %v559, %v557
    %v582 = vpack.c.b16 %v560, %v558
    %v583 = vpack.c.b16 %v563, %v561
    %v584 = vpack.c.b16 %v564, %v562
    %v585 = vpack.c.b16 %v567, %v565
    %v586 = vpack.c.b16 %v568, %v566
    %v587 = vpack.c.b16 %v571, %v569
    %v588 = vpack.c.b16 %v572, %v570
    %605 = vmatpush.bf16.msra.mxu0 %v338
    %606 = vmatpush.bf16.msra.mxu0 %v337
    %607 = vmatpush.bf16.msra.mxu0 %v336
    %608 = vmatpush.bf16.msra.mxu0 %v335
    %609 = vmatpush.bf16.msra.mxu0 %v334
    %610 = vmatpush.bf16.msra.mxu0 %v333
    %611 = vmatpush.bf16.msra.mxu0 %v332
    %612 = vmatpush.bf16.msra.mxu0 %v331
    %613 = vmatmul.bf16.gmra.mxu0 %v573
    %v614 = vpop.f32.mrf.mxu0
    %v615 = vadd.f32 0.0, %v614
    %v616 = vpop.f32.mrf.mxu0
    %v617 = vadd.f32 0.0, %v616
    %618 = vmatmul.bf16.gmra.mxu0 %v575
    %v619 = vpop.f32.mrf.mxu0
    %v620 = vadd.f32 0.0, %v619
    %v621 = vpop.f32.mrf.mxu0
    %v622 = vadd.f32 0.0, %v621
    %623 = vmatmul.bf16.gmra.mxu0 %v577
    %v624 = vpop.f32.mrf.mxu0
    %v625 = vadd.f32 0.0, %v624
    %v626 = vpop.f32.mrf.mxu0
    %v627 = vadd.f32 0.0, %v626
    %628 = vmatmul.bf16.gmra.mxu0 %v579
    %v629 = vpop.f32.mrf.mxu0
    %v630 = vadd.f32 0.0, %v629
    %v631 = vpop.f32.mrf.mxu0
    %v632 = vadd.f32 0.0, %v631
    %633 = vmatmul.bf16.gmra.mxu0 %v581
    %v634 = vpop.f32.mrf.mxu0
    %v635 = vadd.f32 0.0, %v634
    %v636 = vpop.f32.mrf.mxu0
    %v637 = vadd.f32 0.0, %v636
    %638 = vmatmul.bf16.gmra.mxu0 %v583
    %v639 = vpop.f32.mrf.mxu0
    %v640 = vadd.f32 0.0, %v639
    %v641 = vpop.f32.mrf.mxu0
    %v642 = vadd.f32 0.0, %v641
    %643 = vmatmul.bf16.gmra.mxu0 %v585
    %v644 = vpop.f32.mrf.mxu0
    %v645 = vadd.f32 0.0, %v644
    %v646 = vpop.f32.mrf.mxu0
    %v647 = vadd.f32 0.0, %v646
    %648 = vmatmul.bf16.gmra.mxu0 %v587
    %v649 = vpop.f32.mrf.mxu0
    %v650 = vadd.f32 0.0, %v649
    %v651 = vpop.f32.mrf.mxu0
    %v652 = vadd.f32 0.0, %v651
    %653 = vdwg.mxu0
    %654 = vmatpush.bf16.msra.mxu0 %v346
    %655 = vmatpush.bf16.msra.mxu0 %v345
    %656 = vmatpush.bf16.msra.mxu0 %v344
    %657 = vmatpush.bf16.msra.mxu0 %v343
    %658 = vmatpush.bf16.msra.mxu0 %v342
    %659 = vmatpush.bf16.msra.mxu0 %v341
    %660 = vmatpush.bf16.msra.mxu0 %v340
    %661 = vmatpush.bf16.msra.mxu0 %v339
    %662 = vmatmul.bf16.gmra.mxu0 %v574
    %v663 = vpop.f32.mrf.mxu0
    %v664 = vadd.f32 %v615, %v663
    %v665 = vpop.f32.mrf.mxu0
    %v666 = vadd.f32 %v617, %v665
    %667 = vmatmul.bf16.gmra.mxu0 %v576
    %v668 = vpop.f32.mrf.mxu0
    %v669 = vadd.f32 %v620, %v668
    %v670 = vpop.f32.mrf.mxu0
    %v671 = vadd.f32 %v622, %v670
    %672 = vmatmul.bf16.gmra.mxu0 %v578
    %v673 = vpop.f32.mrf.mxu0
    %v674 = vadd.f32 %v625, %v673
    %v675 = vpop.f32.mrf.mxu0
    %v676 = vadd.f32 %v627, %v675
    %677 = vmatmul.bf16.gmra.mxu0 %v580
    %v678 = vpop.f32.mrf.mxu0
    %v679 = vadd.f32 %v630, %v678
    %v680 = vpop.f32.mrf.mxu0
    %v681 = vadd.f32 %v632, %v680
    %682 = vmatmul.bf16.gmra.mxu0 %v582
    %v683 = vpop.f32.mrf.mxu0
    %v684 = vadd.f32 %v635, %v683
    %v685 = vpop.f32.mrf.mxu0
    %v686 = vadd.f32 %v637, %v685
    %687 = vmatmul.bf16.gmra.mxu0 %v584
    %v688 = vpop.f32.mrf.mxu0
    %v689 = vadd.f32 %v640, %v688
    %v690 = vpop.f32.mrf.mxu0
    %v691 = vadd.f32 %v642, %v690
    %692 = vmatmul.bf16.gmra.mxu0 %v586
    %v693 = vpop.f32.mrf.mxu0
    %v694 = vadd.f32 %v645, %v693
    %v695 = vpop.f32.mrf.mxu0
    %v696 = vadd.f32 %v647, %v695
    %697 = vmatmul.bf16.gmra.mxu0 %v588
    %v698 = vpop.f32.mrf.mxu0
    %v699 = vadd.f32 %v650, %v698
    %v700 = vpop.f32.mrf.mxu0
    %v701 = vadd.f32 %v652, %v700
    %702 = vdwg.mxu0
    %v703 = vadd.f32 %v493, %v664
    %v704 = vadd.f32 %v494, %v666
    %v705 = vadd.f32 %v495, %v669
    %v706 = vadd.f32 %v496, %v671
    %v707 = vadd.f32 %v497, %v674
    %v708 = vadd.f32 %v498, %v676
    %v709 = vadd.f32 %v499, %v679
    %v710 = vadd.f32 %v500, %v681
    %v711 = vadd.f32 %v501, %v684
    %v712 = vadd.f32 %v502, %v686
    %v713 = vadd.f32 %v503, %v689
    %v714 = vadd.f32 %v504, %v691
    %v715 = vadd.f32 %v505, %v694
    %v716 = vadd.f32 %v506, %v696
    %v717 = vadd.f32 %v507, %v699
    %v718 = vadd.f32 %v508, %v701
    %719 = vst [vmem:[#allocation3] sm:$0xff] %v703
    %720 = vst [vmem:[#allocation3 + $0x8] sm:$0xff] %v704
    %721 = vst [vmem:[#allocation3 + $0x10] sm:$0xff] %v705
    %722 = vst [vmem:[#allocation3 + $0x18] sm:$0xff] %v706
    %723 = vst [vmem:[#allocation3 + $0x20] sm:$0xff] %v707
    %724 = vst [vmem:[#allocation3 + $0x28] sm:$0xff] %v708
    %725 = vst [vmem:[#allocation3 + $0x30] sm:$0xff] %v709
    %726 = vst [vmem:[#allocation3 + $0x38] sm:$0xff] %v710
    %727 = vst [vmem:[#allocation3 + $0x40] sm:$0xff] %v711
    %728 = vst [vmem:[#allocation3 + $0x48] sm:$0xff] %v712
    %729 = vst [vmem:[#allocation3 + $0x50] sm:$0xff] %v713
    %730 = vst [vmem:[#allocation3 + $0x58] sm:$0xff] %v714
    %731 = vst [vmem:[#allocation3 + $0x60] sm:$0xff] %v715
    %732 = vst [vmem:[#allocation3 + $0x68] sm:$0xff] %v716
    %733 = vst [vmem:[#allocation3 + $0x70] sm:$0xff] %v717
    %734 = vst [vmem:[#allocation3 + $0x78] sm:$0xff] %v718
    // Predicated region
    $region46: #{tpu_custom_call.1} parent=1 // pred_check
      %p735 = pneg %p87
    $region47: #{tpu_custom_call.1} parent=1 // pred_check_branch
      %737 = sbr.rel (%p735) target = $region49
    $region48: #{tpu_custom_call.1} parent=1 // pred_region
      %v738 = vld [vmem:[#allocation2] sm:$0xff]
      %v739 = vld [vmem:[#allocation2 + $0x8] sm:$0xff]
      %v740 = vld [vmem:[#allocation2 + $0x10] sm:$0xff]
      %v741 = vld [vmem:[#allocation2 + $0x18] sm:$0xff]
      %v742 = vld [vmem:[#allocation2 + $0x20] sm:$0xff]
      %v743 = vld [vmem:[#allocation2 + $0x28] sm:$0xff]
      %v744 = vld [vmem:[#allocation2 + $0x30] sm:$0xff]
      %v745 = vld [vmem:[#allocation2 + $0x38] sm:$0xff]
      %v746 = vld [vmem:[#allocation2 + $0x40] sm:$0xff]
      %v747 = vld [vmem:[#allocation2 + $0x48] sm:$0xff]
      %v748 = vld [vmem:[#allocation2 + $0x50] sm:$0xff]
      %v749 = vld [vmem:[#allocation2 + $0x58] sm:$0xff]
      %v750 = vld [vmem:[#allocation2 + $0x60] sm:$0xff]
      %v751 = vld [vmem:[#allocation2 + $0x68] sm:$0xff]
      %v752 = vld [vmem:[#allocation2 + $0x70] sm:$0xff]
      %v753 = vld [vmem:[#allocation2 + $0x78] sm:$0xff]
      %v754 = vld [vmem:[%s3] sm:$0x1]
      %v756 = vperm.slane %v754, 0
      %v758 = vadd.f32 %v738, %v756
      %v759 = vadd.f32 %v739, %v756
      %v760 = vadd.f32 %v740, %v756
      %v761 = vadd.f32 %v741, %v756
      %v762 = vadd.f32 %v742, %v756
      %v763 = vadd.f32 %v743, %v756
      %v764 = vadd.f32 %v744, %v756
      %v765 = vadd.f32 %v745, %v756
      %v766 = vadd.f32 %v746, %v756
      %v767 = vadd.f32 %v747, %v756
      %v768 = vadd.f32 %v748, %v756
      %v769 = vadd.f32 %v749, %v756
      %v770 = vadd.f32 %v750, %v756
      %v771 = vadd.f32 %v751, %v756
      %v772 = vadd.f32 %v752, %v756
      %v773 = vadd.f32 %v753, %v756
      %v774 = vmax.f32 %v758, 0.0
      %v775 = vmax.f32 %v759, 0.0
      %v776 = vmax.f32 %v760, 0.0
      %v777 = vmax.f32 %v761, 0.0
      %v778 = vmax.f32 %v762, 0.0
      %v779 = vmax.f32 %v763, 0.0
      %v780 = vmax.f32 %v764, 0.0
      %v781 = vmax.f32 %v765, 0.0
      %v782 = vmax.f32 %v766, 0.0
      %v783 = vmax.f32 %v767, 0.0
      %v784 = vmax.f32 %v768, 0.0
      %v785 = vmax.f32 %v769, 0.0
      %v786 = vmax.f32 %v770, 0.0
      %v787 = vmax.f32 %v771, 0.0
      %v788 = vmax.f32 %v772, 0.0
      %v789 = vmax.f32 %v773, 0.0
      %v790 = vld [vmem:[#allocation3] sm:$0xff]
      %v791 = vld [vmem:[#allocation3 + $0x8] sm:$0xff]
      %v792 = vld [vmem:[#allocation3 + $0x10] sm:$0xff]
      %v793 = vld [vmem:[#allocation3 + $0x18] sm:$0xff]
      %v794 = vld [vmem:[#allocation3 + $0x20] sm:$0xff]
      %v795 = vld [vmem:[#allocation3 + $0x28] sm:$0xff]
      %v796 = vld [vmem:[#allocation3 + $0x30] sm:$0xff]
      %v797 = vld [vmem:[#allocation3 + $0x38] sm:$0xff]
      %v798 = vld [vmem:[#allocation3 + $0x40] sm:$0xff]
      %v799 = vld [vmem:[#allocation3 + $0x48] sm:$0xff]
      %v800 = vld [vmem:[#allocation3 + $0x50] sm:$0xff]
      %v801 = vld [vmem:[#allocation3 + $0x58] sm:$0xff]
      %v802 = vld [vmem:[#allocation3 + $0x60] sm:$0xff]
      %v803 = vld [vmem:[#allocation3 + $0x68] sm:$0xff]
      %v804 = vld [vmem:[#allocation3 + $0x70] sm:$0xff]
      %v805 = vld [vmem:[#allocation3 + $0x78] sm:$0xff]
      %v806 = vadd.f32 %v790, %v756
      %v807 = vadd.f32 %v791, %v756
      %v808 = vadd.f32 %v792, %v756
      %v809 = vadd.f32 %v793, %v756
      %v810 = vadd.f32 %v794, %v756
      %v811 = vadd.f32 %v795, %v756
      %v812 = vadd.f32 %v796, %v756
      %v813 = vadd.f32 %v797, %v756
      %v814 = vadd.f32 %v798, %v756
      %v815 = vadd.f32 %v799, %v756
      %v816 = vadd.f32 %v800, %v756
      %v817 = vadd.f32 %v801, %v756
      %v818 = vadd.f32 %v802, %v756
      %v819 = vadd.f32 %v803, %v756
      %v820 = vadd.f32 %v804, %v756
      %v821 = vadd.f32 %v805, %v756
      %v822 = vmax.f32 %v806, 0.0
      %v823 = vmax.f32 %v807, 0.0
      %v824 = vmax.f32 %v808, 0.0
      %v825 = vmax.f32 %v809, 0.0
      %v826 = vmax.f32 %v810, 0.0
      %v827 = vmax.f32 %v811, 0.0
      %v828 = vmax.f32 %v812, 0.0
      %v829 = vmax.f32 %v813, 0.0
      %v830 = vmax.f32 %v814, 0.0
      %v831 = vmax.f32 %v815, 0.0
      %v832 = vmax.f32 %v816, 0.0
      %v833 = vmax.f32 %v817, 0.0
      %v834 = vmax.f32 %v818, 0.0
      %v835 = vmax.f32 %v819, 0.0
      %v836 = vmax.f32 %v820, 0.0
      %v837 = vmax.f32 %v821, 0.0
      %v838 = vrot.slane %v774, 4
      %v839 = vadd.f32 %v774, %v838
      %v840 = vrot.slane %v839, 2
      %v841 = vadd.f32 %v839, %v840
      %v842 = vrot.slane %v841, 1
      %v843 = vadd.f32 %v841, %v842
      %v844 = vrot.slane %v775, 4
      %v845 = vadd.f32 %v775, %v844
      %v846 = vrot.slane %v845, 2
      %v847 = vadd.f32 %v845, %v846
      %v848 = vrot.slane %v847, 1
      %v849 = vadd.f32 %v847, %v848
      %v850 = vrot.slane %v776, 4
      %v851 = vadd.f32 %v776, %v850
      %v852 = vrot.slane %v851, 2
      %v853 = vadd.f32 %v851, %v852
      %v854 = vrot.slane %v853, 1
      %v855 = vadd.f32 %v853, %v854
      %v856 = vrot.slane %v777, 4
      %v857 = vadd.f32 %v777, %v856
      %v858 = vrot.slane %v857, 2
      %v859 = vadd.f32 %v857, %v858
      %v860 = vrot.slane %v859, 1
      %v861 = vadd.f32 %v859, %v860
      %v862 = vrot.slane %v778, 4
      %v863 = vadd.f32 %v778, %v862
      %v864 = vrot.slane %v863, 2
      %v865 = vadd.f32 %v863, %v864
      %v866 = vrot.slane %v865, 1
      %v867 = vadd.f32 %v865, %v866
      %v868 = vrot.slane %v779, 4
      %v869 = vadd.f32 %v779, %v868
      %v870 = vrot.slane %v869, 2
      %v871 = vadd.f32 %v869, %v870
      %v872 = vrot.slane %v871, 1
      %v873 = vadd.f32 %v871, %v872
      %v874 = vrot.slane %v780, 4
      %v875 = vadd.f32 %v780, %v874
      %v876 = vrot.slane %v875, 2
      %v877 = vadd.f32 %v875, %v876
      %v878 = vrot.slane %v877, 1
      %v879 = vadd.f32 %v877, %v878
      %v880 = vrot.slane %v781, 4
      %v881 = vadd.f32 %v781, %v880
      %v882 = vrot.slane %v881, 2
      %v883 = vadd.f32 %v881, %v882
      %v884 = vrot.slane %v883, 1
      %v885 = vadd.f32 %v883, %v884
      %v886 = vrot.slane %v782, 4
      %v887 = vadd.f32 %v782, %v886
      %v888 = vrot.slane %v887, 2
      %v889 = vadd.f32 %v887, %v888
      %v890 = vrot.slane %v889, 1
      %v891 = vadd.f32 %v889, %v890
      %v892 = vrot.slane %v783, 4
      %v893 = vadd.f32 %v783, %v892
      %v894 = vrot.slane %v893, 2
      %v895 = vadd.f32 %v893, %v894
      %v896 = vrot.slane %v895, 1
      %v897 = vadd.f32 %v895, %v896
      %v898 = vrot.slane %v784, 4
      %v899 = vadd.f32 %v784, %v898
      %v900 = vrot.slane %v899, 2
      %v901 = vadd.f32 %v899, %v900
      %v902 = vrot.slane %v901, 1
      %v903 = vadd.f32 %v901, %v902
      %v904 = vrot.slane %v785, 4
      %v905 = vadd.f32 %v785, %v904
      %v906 = vrot.slane %v905, 2
      %v907 = vadd.f32 %v905, %v906
      %v908 = vrot.slane %v907, 1
      %v909 = vadd.f32 %v907, %v908
      %v910 = vrot.slane %v786, 4
      %v911 = vadd.f32 %v786, %v910
      %v912 = vrot.slane %v911, 2
      %v913 = vadd.f32 %v911, %v912
      %v914 = vrot.slane %v913, 1
      %v915 = vadd.f32 %v913, %v914
      %v916 = vrot.slane %v787, 4
      %v917 = vadd.f32 %v787, %v916
      %v918 = vrot.slane %v917, 2
      %v919 = vadd.f32 %v917, %v918
      %v920 = vrot.slane %v919, 1
      %v921 = vadd.f32 %v919, %v920
      %v922 = vrot.slane %v788, 4
      %v923 = vadd.f32 %v788, %v922
      %v924 = vrot.slane %v923, 2
      %v925 = vadd.f32 %v923, %v924
      %v926 = vrot.slane %v925, 1
      %v927 = vadd.f32 %v925, %v926
      %v928 = vrot.slane %v789, 4
      %v929 = vadd.f32 %v789, %v928
      %v930 = vrot.slane %v929, 2
      %v931 = vadd.f32 %v929, %v930
      %v932 = vrot.slane %v931, 1
      %v933 = vadd.f32 %v931, %v932
      %v934 = vrot.slane %v822, 4
      %v935 = vadd.f32 %v822, %v934
      %v936 = vrot.slane %v935, 2
      %v937 = vadd.f32 %v935, %v936
      %v938 = vrot.slane %v937, 1
      %v939 = vadd.f32 %v937, %v938
      %v940 = vrot.slane %v823, 4
      %v941 = vadd.f32 %v823, %v940
      %v942 = vrot.slane %v941, 2
      %v943 = vadd.f32 %v941, %v942
      %v944 = vrot.slane %v943, 1
      %v945 = vadd.f32 %v943, %v944
      %v946 = vrot.slane %v824, 4
      %v947 = vadd.f32 %v824, %v946
      %v948 = vrot.slane %v947, 2
      %v949 = vadd.f32 %v947, %v948
      %v950 = vrot.slane %v949, 1
      %v951 = vadd.f32 %v949, %v950
      %v952 = vrot.slane %v825, 4
      %v953 = vadd.f32 %v825, %v952
      %v954 = vrot.slane %v953, 2
      %v955 = vadd.f32 %v953, %v954
      %v956 = vrot.slane %v955, 1
      %v957 = vadd.f32 %v955, %v956
      %v958 = vrot.slane %v826, 4
      %v959 = vadd.f32 %v826, %v958
      %v960 = vrot.slane %v959, 2
      %v961 = vadd.f32 %v959, %v960
      %v962 = vrot.slane %v961, 1
      %v963 = vadd.f32 %v961, %v962
      %v964 = vrot.slane %v827, 4
      %v965 = vadd.f32 %v827, %v964
      %v966 = vrot.slane %v965, 2
      %v967 = vadd.f32 %v965, %v966
      %v968 = vrot.slane %v967, 1
      %v969 = vadd.f32 %v967, %v968
      %v970 = vrot.slane %v828, 4
      %v971 = vadd.f32 %v828, %v970
      %v972 = vrot.slane %v971, 2
      %v973 = vadd.f32 %v971, %v972
      %v974 = vrot.slane %v973, 1
      %v975 = vadd.f32 %v973, %v974
      %v976 = vrot.slane %v829, 4
      %v977 = vadd.f32 %v829, %v976
      %v978 = vrot.slane %v977, 2
      %v979 = vadd.f32 %v977, %v978
      %v980 = vrot.slane %v979, 1
      %v981 = vadd.f32 %v979, %v980
      %v982 = vrot.slane %v830, 4
      %v983 = vadd.f32 %v830, %v982
      %v984 = vrot.slane %v983, 2
      %v985 = vadd.f32 %v983, %v984
      %v986 = vrot.slane %v985, 1
      %v987 = vadd.f32 %v985, %v986
      %v988 = vrot.slane %v831, 4
      %v989 = vadd.f32 %v831, %v988
      %v990 = vrot.slane %v989, 2
      %v991 = vadd.f32 %v989, %v990
      %v992 = vrot.slane %v991, 1
      %v993 = vadd.f32 %v991, %v992
      %v994 = vrot.slane %v832, 4
      %v995 = vadd.f32 %v832, %v994
      %v996 = vrot.slane %v995, 2
      %v997 = vadd.f32 %v995, %v996
      %v998 = vrot.slane %v997, 1
      %v999 = vadd.f32 %v997, %v998
      %v1000 = vrot.slane %v833, 4
      %v1001 = vadd.f32 %v833, %v1000
      %v1002 = vrot.slane %v1001, 2
      %v1003 = vadd.f32 %v1001, %v1002
      %v1004 = vrot.slane %v1003, 1
      %v1005 = vadd.f32 %v1003, %v1004
      %v1006 = vrot.slane %v834, 4
      %v1007 = vadd.f32 %v834, %v1006
      %v1008 = vrot.slane %v1007, 2
      %v1009 = vadd.f32 %v1007, %v1008
      %v1010 = vrot.slane %v1009, 1
      %v1011 = vadd.f32 %v1009, %v1010
      %v1012 = vrot.slane %v835, 4
      %v1013 = vadd.f32 %v835, %v1012
      %v1014 = vrot.slane %v1013, 2
      %v1015 = vadd.f32 %v1013, %v1014
      %v1016 = vrot.slane %v1015, 1
      %v1017 = vadd.f32 %v1015, %v1016
      %v1018 = vrot.slane %v836, 4
      %v1019 = vadd.f32 %v836, %v1018
      %v1020 = vrot.slane %v1019, 2
      %v1021 = vadd.f32 %v1019, %v1020
      %v1022 = vrot.slane %v1021, 1
      %v1023 = vadd.f32 %v1021, %v1022
      %v1024 = vrot.slane %v837, 4
      %v1025 = vadd.f32 %v837, %v1024
      %v1026 = vrot.slane %v1025, 2
      %v1027 = vadd.f32 %v1025, %v1026
      %v1028 = vrot.slane %v1027, 1
      %v1029 = vadd.f32 %v1027, %v1028
      %v1030 = vadd.f32 %v843, %v939
      %v1031 = vadd.f32 %v849, %v945
      %v1032 = vadd.f32 %v855, %v951
      %v1033 = vadd.f32 %v861, %v957
      %v1034 = vadd.f32 %v867, %v963
      %v1035 = vadd.f32 %v873, %v969
      %v1036 = vadd.f32 %v879, %v975
      %v1037 = vadd.f32 %v885, %v981
      %v1038 = vadd.f32 %v891, %v987
      %v1039 = vadd.f32 %v897, %v993
      %v1040 = vadd.f32 %v903, %v999
      %v1041 = vadd.f32 %v909, %v1005
      %v1042 = vadd.f32 %v915, %v1011
      %v1043 = vadd.f32 %v921, %v1017
      %v1044 = vadd.f32 %v927, %v1023
      %v1045 = vadd.f32 %v933, %v1029
      %v1046 = vmul.f32 %v1030, 0.0625
      %v1047 = vmul.f32 %v1031, 0.0625
      %v1048 = vmul.f32 %v1032, 0.0625
      %v1049 = vmul.f32 %v1033, 0.0625
      %v1050 = vmul.f32 %v1034, 0.0625
      %v1051 = vmul.f32 %v1035, 0.0625
      %v1052 = vmul.f32 %v1036, 0.0625
      %v1053 = vmul.f32 %v1037, 0.0625
      %v1054 = vmul.f32 %v1038, 0.0625
      %v1055 = vmul.f32 %v1039, 0.0625
      %v1056 = vmul.f32 %v1040, 0.0625
      %v1057 = vmul.f32 %v1041, 0.0625
      %v1058 = vmul.f32 %v1042, 0.0625
      %v1059 = vmul.f32 %v1043, 0.0625
      %v1060 = vmul.f32 %v1044, 0.0625
      %v1061 = vmul.f32 %v1045, 0.0625
      %v1062 = vpack.c.bf16 %v1046, %v1046
      %v1063 = vpack.c.bf16 %v1047, %v1047
      %v1064 = vpack.c.bf16 %v1048, %v1048
      %v1065 = vpack.c.bf16 %v1049, %v1049
      %v1066 = vpack.c.bf16 %v1050, %v1050
      %v1067 = vpack.c.bf16 %v1051, %v1051
      %v1068 = vpack.c.bf16 %v1052, %v1052
      %v1069 = vpack.c.bf16 %v1053, %v1053
      %v1070 = vpack.c.bf16 %v1054, %v1054
      %v1071 = vpack.c.bf16 %v1055, %v1055
      %v1072 = vpack.c.bf16 %v1056, %v1056
      %v1073 = vpack.c.bf16 %v1057, %v1057
      %v1074 = vpack.c.bf16 %v1058, %v1058
      %v1075 = vpack.c.bf16 %v1059, %v1059
      %v1076 = vpack.c.bf16 %v1060, %v1060
      %v1077 = vpack.c.bf16 %v1061, %v1061
      %v1078 = vld [vmem:[#allocation10] sm:$0xf]
      %v1079 = vld [vmem:[#allocation10 + $0x4] sm:$0xf]
      %v1080 = vld [vmem:[#allocation10 + $0x8] sm:$0xf]
      %v1081 = vld [vmem:[#allocation10 + $0xc] sm:$0xf]
      %v1082 = vld [vmem:[#allocation10 + $0x10] sm:$0xf]
      %v1083 = vld [vmem:[#allocation10 + $0x14] sm:$0xf]
      %v1084 = vld [vmem:[#allocation10 + $0x18] sm:$0xf]
      %v1085 = vld [vmem:[#allocation10 + $0x1c] sm:$0xf]
      %v1086 = vld [vmem:[#allocation10 + $0x20] sm:$0xf]
      %v1087 = vld [vmem:[#allocation10 + $0x24] sm:$0xf]
      %v1088 = vld [vmem:[#allocation10 + $0x28] sm:$0xf]
      %v1089 = vld [vmem:[#allocation10 + $0x2c] sm:$0xf]
      %v1090 = vld [vmem:[#allocation10 + $0x30] sm:$0xf]
      %v1091 = vld [vmem:[#allocation10 + $0x34] sm:$0xf]
      %v1092 = vld [vmem:[#allocation10 + $0x38] sm:$0xf]
      %v1093 = vld [vmem:[#allocation10 + $0x3c] sm:$0xf]
      %v1094 = vld [vmem:[%s5] sm:$0x1]
      %v1096 = vperm.slane %v1094, 0
      %v1114 = vunpack.c.l.b16 %v1062
      %v1115 = vunpack.c.l.b16 %v1063
      %v1116 = vunpack.c.l.b16 %v1064
      %v1117 = vunpack.c.l.b16 %v1065
      %v1118 = vunpack.c.l.b16 %v1066
      %v1119 = vunpack.c.l.b16 %v1067
      %v1120 = vunpack.c.l.b16 %v1068
      %v1121 = vunpack.c.l.b16 %v1069
      %v1122 = vunpack.c.l.b16 %v1070
      %v1123 = vunpack.c.l.b16 %v1071
      %v1124 = vunpack.c.l.b16 %v1072
      %v1125 = vunpack.c.l.b16 %v1073
      %v1126 = vunpack.c.l.b16 %v1074
      %v1127 = vunpack.c.l.b16 %v1075
      %v1128 = vunpack.c.l.b16 %v1076
      %v1129 = vunpack.c.l.b16 %v1077
      %vm1130 = vcmask 1041409
      %v1131 = vsel %vm1130, %v1115, %v1114
      %vm1132 = vcmask 1042434
      %v1133 = vsel %vm1132, %v1116, %v1131
      %vm1134 = vcmask 1043459
      %v1135 = vsel %vm1134, %v1117, %v1133
      %vm1136 = vcmask 1044484
      %v1137 = vsel %vm1136, %v1118, %v1135
      %vm1138 = vcmask 1045509
      %v1139 = vsel %vm1138, %v1119, %v1137
      %vm1140 = vcmask 1046534
      %v1141 = vsel %vm1140, %v1120, %v1139
      %vm1142 = vcmask 1047559
      %v1143 = vsel %vm1142, %v1121, %v1141
      %v1144 = vsel %vm1130, %v1123, %v1122
      %v1145 = vsel %vm1132, %v1124, %v1144
      %v1146 = vsel %vm1134, %v1125, %v1145
      %v1147 = vsel %vm1136, %v1126, %v1146
      %v1148 = vsel %vm1138, %v1127, %v1147
      %v1149 = vsel %vm1140, %v1128, %v1148
      %v1150 = vsel %vm1142, %v1129, %v1149
      %v1151 = vpack.c.b16 %v1150, %v1143
      %v1169 = vunpack.c.l.b16 %v1078
      %v1170 = vunpack.c.l.b16 %v1079
      %v1171 = vunpack.c.l.b16 %v1080
      %v1172 = vunpack.c.l.b16 %v1081
      %v1173 = vunpack.c.l.b16 %v1082
      %v1174 = vunpack.c.l.b16 %v1083
      %v1175 = vunpack.c.l.b16 %v1084
      %v1176 = vunpack.c.l.b16 %v1085
      %v1177 = vunpack.c.l.b16 %v1086
      %v1178 = vunpack.c.l.b16 %v1087
      %v1179 = vunpack.c.l.b16 %v1088
      %v1180 = vunpack.c.l.b16 %v1089
      %v1181 = vunpack.c.l.b16 %v1090
      %v1182 = vunpack.c.l.b16 %v1091
      %v1183 = vunpack.c.l.b16 %v1092
      %v1184 = vunpack.c.l.b16 %v1093
      %v1185 = vpack.c.b16 %v1170, %v1169
      %v1186 = vpack.c.b16 %v1172, %v1171
      %v1187 = vpack.c.b16 %v1174, %v1173
      %v1188 = vpack.c.b16 %v1176, %v1175
      %v1189 = vpack.c.b16 %v1178, %v1177
      %v1190 = vpack.c.b16 %v1180, %v1179
      %v1191 = vpack.c.b16 %v1182, %v1181
      %v1192 = vpack.c.b16 %v1184, %v1183
      %1201 = vmatpush.bf16.msra.mxu0 %v1192
      %1202 = vmatpush.bf16.msra.mxu0 %v1191
      %1203 = vmatpush.bf16.msra.mxu0 %v1190
      %1204 = vmatpush.bf16.msra.mxu0 %v1189
      %1205 = vmatpush.bf16.msra.mxu0 %v1188
      %1206 = vmatpush.bf16.msra.mxu0 %v1187
      %1207 = vmatpush.bf16.msra.mxu0 %v1186
      %1208 = vmatpush.bf16.msra.mxu0 %v1185
      %1209 = vmatmul.bf16.gmra.mxu0 %v1151
      %v1210 = vpop.f32.mrf.mxu0
      %v1211 = vadd.f32 %v1096, %v1210
      %v1212 = vpop.f32.mrf.mxu0
      %v1213 = vadd.f32 %v1096, %v1212
      %1214 = vdwg.mxu0
      %1215 = vst [vmem:[#allocation12] sm:$0xff] %v1211
      %1216 = vst [vmem:[#allocation12 + $0x8] sm:$0xff] %v1213
    $region49: #{tpu_custom_call.1} parent=1 // pred_fallthru
      _
    // Predicated region
    $region50: #{tpu_custom_call.1} parent=1 // pred_check
      _
    $region51: #{tpu_custom_call.1} parent=1 // pred_check_branch
      %1218 = sbr.rel (0) target = $region53
    $region52: #{tpu_custom_call.1} parent=1 // pred_region
      %1220 = vsyncadd [#allocation6], 0
      %s1221 = sshll.u32 [#allocation12], 4
      %s1222 = int_to_ptr.vmem [resolvable:$true] %s1221
      %s1223 = sshll.u32 %s6, 4
      %s1224 = int_to_ptr.hbm [resolvable:$true] %s1223
      %1229 = dma.vmem_to_hbm [thread:$0]  %s1222, 256, %s1224, [#allocation6], 128, 128, 8
    $region53: #{tpu_custom_call.1} parent=1 // pred_fallthru
      _
    // Predicated region
    $region54: #{tpu_custom_call.1} parent=1 // pred_check
      _
    $region55: #{tpu_custom_call.1} parent=1 // pred_check_branch
      %1231 = sbr.rel (0) target = $region57
    $region56: #{tpu_custom_call.1} parent=1 // pred_region
      %1233 = dma.done [#allocation6], 256
    $region57: #{tpu_custom_call.1} parent=1 // pred_fallthru
      _
    %1234 = vsyncpa [#allocation5], 1
    %1235 = vsyncpa [#allocation8], 1
    %1236 = vsyncpa [#allocation11], 1
    %1237 = vsyncpa [#allocation6], 1

</llo_original>
